<compile_context>
chip_gen: v5e
topology: v5e:2x2
jax: 0.10.0
libtpu: 0.0.40
codegen_flags: <defaults>
</compile_context>

<pallas_src>
import functools

import jax
import jax.numpy as jnp
from jax.experimental import pallas as pl
from jax.experimental.pallas import tpu as pltpu


# ------------------------------ in-kernel helpers ----------------------------

def _conv1d_relu(x, w, b, padding, *, pre_padded):
    # x: (Bt, T_in, Cin) channels-last; w: (K*Cin, Cout) rows ordered tap-major
    # (k outer, cin inner) to match the im2col below; b: (1, Cout).
    # TODO(synk): only stride == 1 is implemented (static tap slices assume it).
    Bt, _, Cin = x.shape
    KCin, Cout = w.shape
    K = KCin // Cin
    if (not pre_padded) and padding > 0:
        # Only hit for stacked conv layers (not traced for the default config).
        z = jnp.zeros((Bt, padding, Cin), jnp.float32)
        x = jnp.concatenate([z, x, z], axis=1)
    T_out = x.shape[1] - K + 1
    # im2col: fuse the K taps into one MXU matmul (3 pushes + 2 adds -> 1 push).
    taps = jnp.concatenate([x[:, k:k + T_out, :] for k in range(K)], axis=-1)
    y = jnp.dot(taps.reshape(Bt * T_out, KCin), w,
                preferred_element_type=jnp.float32) + b
    return jnp.maximum(y, 0.0).reshape(Bt, T_out, Cout)       # ReLU


def _lstm_layer(x_seq, wih, whh, bias, hs_scr):
    # x_seq: (Bt, T, Cin); wih: (Cin, 4H); whh: (H, 4H); bias: (1, 4H).
    # Gate blocks packed i|f|g|o along the lane axis (4H == 128 for H == 32).
    # bias = b_ih + b_hh (combined in the wrapper / init).
    # hs_scr: (Bt, T, H) VMEM scratch collecting per-timestep h (read back once).
    Bt, T, Cin = x_seq.shape
    H = whh.shape[0]
    # Hoisted input projection + bias: one matmul for all timesteps and gates.
    gx = jnp.dot(x_seq.reshape(Bt * T, Cin), wih,
                 preferred_element_type=jnp.float32) + bias
    gx = gx.reshape(Bt, T, 4 * H)
    h = jnp.zeros((Bt, H), jnp.float32)
    c = jnp.zeros((Bt, H), jnp.float32)
    # Fully unrolled recurrence (T static & small); only h @ W_hh is serial.
    # TODO(synk): for long EEG sequences switch to a time-chunked fori_loop and
    # re-budget the whole-sequence-resident gx/hs against v7x's 64 MiB VMEM.
    for t in range(T):
        pre = gx[:, t, :] + jnp.dot(h, whh,
                                    preferred_element_type=jnp.float32)  # (Bt, 4H)
        sig = jax.nn.sigmoid(pre)            # one EUP pass covers i, f, o lanes
        tnh = jnp.tanh(pre)                  # one EUP pass covers the g lanes
        i_g = sig[:, 0 * H:1 * H]
        f_g = sig[:, 1 * H:2 * H]
        g_g = tnh[:, 2 * H:3 * H]
        o_g = sig[:, 3 * H:4 * H]
        c = f_g * c + i_g * g_g
        h = o_g * jnp.tanh(c)
        hs_scr[:, t, :] = h                  # static-index store, off crit path
    return hs_scr[...]                       # (Bt, T, H)


def _fc(x, w, b, relu):
    # x: (Bt, T, Din); w: (Din, Dout); b: (1, Dout)
    Bt, T, Din = x.shape
    y = jnp.dot(x.reshape(Bt * T, Din), w, preferred_element_type=jnp.float32) + b
    if relu:
        y = jnp.maximum(y, 0.0)
    return y.reshape(Bt, T, -1)


# ------------------------------- fused kernel --------------------------------

def _fused_encoder_kernel(*refs, n_conv, n_lstm, n_fc, conv_pads, fc_relu):
    # refs = [x] + [cw, cb]*n_conv + [wih, whh, lb]*n_lstm + [fw, fb]*n_fc
    #        + [o_ref] + [hs_scr]*n_lstm
    it = iter(refs)
    x_ref = next(it)
    conv_p = [(next(it), next(it)) for _ in range(n_conv)]
    lstm_p = [(next(it), next(it), next(it)) for _ in range(n_lstm)]
    fc_p = [(next(it), next(it)) for _ in range(n_fc)]
    o_ref = next(it)
    hs_scrs = [next(it) for _ in range(n_lstm)]

    cur = x_ref[...]                                     # (Bt, T_pad, Cin)
    for li, (w_ref, b_ref) in enumerate(conv_p):
        cur = _conv1d_relu(cur, w_ref[...], b_ref[...], conv_pads[li],
                           pre_padded=(li == 0))
    for li, (wih_ref, whh_ref, lb_ref) in enumerate(lstm_p):
        cur = _lstm_layer(cur, wih_ref[...], whh_ref[...], lb_ref[...],
                          hs_scrs[li])
    for li, (fw_ref, fb_ref) in enumerate(fc_p):
        cur = _fc(cur, fw_ref[...], fb_ref[...], fc_relu[li])
    o_ref[...] = cur.astype(o_ref.dtype)                 # single store per block


# ------------------------------ encoder wrapper ------------------------------

def encoder_forward(x_ncw, params, *, max_batch_tile=8):
    """x_ncw: (batch, n_channels, time), matching the PyTorch forward input."""
    conv_ps = params["conv"]
    lstm_ps = params["lstm"]
    fc_ps = params["fc"]
    B, Cin, T = x_ncw.shape

    # Channels-last + zero pad for the first conv: one tiny fused XLA op.
    # TODO(synk): fold this transpose+pad into the kernel (in-register (Cin,T)
    # transpose) to drop the extra launch; kept here for lowering robustness.
    pad0 = conv_ps[0]["padding"]
    x_pad = jnp.pad(jnp.swapaxes(x_ncw, 1, 2),
                    ((0, 0), (pad0, pad0), (0, 0))).astype(jnp.float32)
    T_pad = T + 2 * pad0

    # Static shape tracing through the conv chain (stride == 1 only).
    c_in, t_cur = Cin, T_pad
    for i, p in enumerate(conv_ps):
        KCin, c_out = p["w"].shape
        K = KCin // c_in
        if i > 0:
            t_cur = t_cur + 2 * p["padding"]
        t_cur = t_cur - K + 1
        c_in = c_out
    T_seq = t_cur
    lstm_hs = [p["whh"].shape[0] for p in lstm_ps]
    F_out = fc_ps[-1]["w"].shape[-1] if fc_ps else lstm_hs[-1]

    # Batch tiling: up to 8 sequences share the sublane axis of every matmul
    # (for the demo's B=2 the unrolled recurrence runs once, not B times).
    # Remaining blocks map to a "parallel" grid (one per TensorCore on v7x).
    B_tile = min(B, max_batch_tile)
    n_blocks = pl.cdiv(B, B_tile)
    B_padded = n_blocks * B_tile
    if B_padded != B:
        x_pad = jnp.pad(x_pad, ((0, B_padded - B), (0, 0), (0, 0)))

    inputs = [x_pad]
    in_specs = [pl.BlockSpec((B_tile, T_pad, Cin), lambda b: (b, 0, 0))]

    def full_spec(a):
        zeros = (0,) * a.ndim
        return pl.BlockSpec(a.shape, lambda b, z=zeros: z)

    for p in conv_ps:
        for a in (p["w"], p["b"]):
            inputs.append(a)
            in_specs.append(full_spec(a))
    for p in lstm_ps:
        for a in (p["wih"], p["whh"], p["b"]):
            inputs.append(a)
            in_specs.append(full_spec(a))
    for p in fc_ps:
        for a in (p["w"], p["b"]):
            inputs.append(a)
            in_specs.append(full_spec(a))

    kernel = functools.partial(
        _fused_encoder_kernel,
        n_conv=len(conv_ps), n_lstm=len(lstm_ps), n_fc=len(fc_ps),
        conv_pads=tuple(p["padding"] for p in conv_ps),
        fc_relu=tuple(bool(p["relu"]) for p in fc_ps))

    out = pl.pallas_call(
        kernel,
        out_shape=jax.ShapeDtypeStruct((B_padded, T_seq, F_out), jnp.float32),
        grid=(n_blocks,),
        in_specs=in_specs,
        out_specs=pl.BlockSpec((B_tile, T_seq, F_out), lambda b: (b, 0, 0)),
        scratch_shapes=[pltpu.VMEM((B_tile, T_seq, h), jnp.float32)
                        for h in lstm_hs],
        compiler_params=pltpu.CompilerParams(
            dimension_semantics=("parallel",)),
    )(*inputs)
    return out[:B] if B_padded != B else out


# ---------------------------- deterministic params ---------------------------

def init_params(key, n_channels=4, conv_out=8, kernel_size=3, padding=1,
                hidden_size=32, fc_out=16):
    ks = jax.random.split(key, 7)
    s = 0.1
    # Conv1d: PyTorch weight (Cout, Cin, K) -> permute(2,1,0) -> reshape
    # (K*Cin, Cout): tap-major rows matching the in-kernel im2col.
    conv_w = (s * jax.random.normal(
        ks[0], (kernel_size, n_channels, conv_out), jnp.float32)
    ).reshape(kernel_size * n_channels, conv_out)
    conv_b = s * jax.random.normal(ks[1], (1, conv_out), jnp.float32)
    # LSTM: PyTorch W_ih (4H, Cin) / W_hh (4H, H) with gate blocks i|f|g|o
    # stacked on the 4H axis -> stored transposed so gates pack the lane axis:
    # (Cin, 4H) / (H, 4H).  b = b_ih + b_hh (single combined bias), (1, 4H).
    wih = s * jax.random.normal(ks[2], (conv_out, 4 * hidden_size), jnp.float32)
    whh = s * jax.random.normal(ks[3], (hidden_size, 4 * hidden_size), jnp.float32)
    b_lstm = s * jax.random.normal(ks[4], (1, 4 * hidden_size), jnp.float32)
    # Linear: PyTorch weight (F, H) -> stored transposed (H, F).
    fc_w = s * jax.random.normal(ks[5], (hidden_size, fc_out), jnp.float32)
    fc_b = s * jax.random.normal(ks[6], (1, fc_out), jnp.float32)
    return {
        "conv": [{"w": conv_w, "b": conv_b, "padding": padding}],
        "lstm": [{"wih": wih, "whh": whh, "b": b_lstm}],
        "fc": [{"w": fc_w, "b": fc_b, "relu": True}],   # activation='ReLU'
    }


if __name__ == "__main__":
    key = jax.random.PRNGKey(0)
    pkey, xkey = jax.random.split(key)

    B, n_channels, T = 2, 4, 16
    params = init_params(pkey, n_channels=n_channels)

    x = jax.random.normal(xkey, (B, n_channels, T), jnp.float32)  # NCW, as in PyTorch

    fwd = jax.jit(lambda inp: encoder_forward(inp, params))
    out = jax.block_until_ready(fwd(x))
    assert out.shape == (B, T, 16), out.shape
    assert bool(jnp.all(jnp.isfinite(out)))
    print("KERNEL_OK")
</pallas_src>

<mosaic_0001>
module attributes {stable_mosaic.version = 11 : i64} {
  func.func @_fused_encoder_kernel(%arg0: i32, %arg1: memref<2x18x4xf32, #tpu.memory_space<vmem>>, %arg2: memref<12x8xf32, #tpu.memory_space<vmem>>, %arg3: memref<1x8xf32, #tpu.memory_space<vmem>>, %arg4: memref<8x128xf32, #tpu.memory_space<vmem>>, %arg5: memref<32x128xf32, #tpu.memory_space<vmem>>, %arg6: memref<1x128xf32, #tpu.memory_space<vmem>>, %arg7: memref<32x16xf32, #tpu.memory_space<vmem>>, %arg8: memref<1x16xf32, #tpu.memory_space<vmem>>, %arg9: memref<2x16x16xf32, #tpu.memory_space<vmem>>, %arg10: memref<2x16x32xf32, #tpu.memory_space<vmem>>) attributes {dimension_semantics = [#tpu.dimension_semantics<parallel>], iteration_bounds = array<i64: 1>, scalar_prefetch = 0 : i64, scratch_operands = 1 : i64, tpu.core_type = #tpu.core_type<tc>, window_params = [{transform_indices = @transform_0, window_bounds = array<i64: 2, 18, 4>}, {pipeline_mode = #tpu.pipeline_mode<synchronous>, transform_indices = @transform_1, window_bounds = array<i64: 12, 8>}, {pipeline_mode = #tpu.pipeline_mode<synchronous>, transform_indices = @transform_2, window_bounds = array<i64: 1, 8>}, {pipeline_mode = #tpu.pipeline_mode<synchronous>, transform_indices = @transform_3, window_bounds = array<i64: 8, 128>}, {pipeline_mode = #tpu.pipeline_mode<synchronous>, transform_indices = @transform_4, window_bounds = array<i64: 32, 128>}, {pipeline_mode = #tpu.pipeline_mode<synchronous>, transform_indices = @transform_5, window_bounds = array<i64: 1, 128>}, {pipeline_mode = #tpu.pipeline_mode<synchronous>, transform_indices = @transform_6, window_bounds = array<i64: 32, 16>}, {pipeline_mode = #tpu.pipeline_mode<synchronous>, transform_indices = @transform_7, window_bounds = array<i64: 1, 16>}, {transform_indices = @transform_8, window_bounds = array<i64: 2, 16, 16>}]} {
    %c0 = arith.constant 0 : index
    %c0_0 = arith.constant 0 : index
    %c0_1 = arith.constant 0 : index
    %0 = vector.load %arg1[%c0, %c0_0, %c0_1] : memref<2x18x4xf32, #tpu.memory_space<vmem>>, vector<2x18x4xf32>
    %c0_2 = arith.constant 0 : index
    %c0_3 = arith.constant 0 : index
    %1 = vector.load %arg2[%c0_2, %c0_3] : memref<12x8xf32, #tpu.memory_space<vmem>>, vector<12x8xf32>
    %c0_4 = arith.constant 0 : index
    %c0_5 = arith.constant 0 : index
    %2 = vector.load %arg3[%c0_4, %c0_5] : memref<1x8xf32, #tpu.memory_space<vmem>>, vector<1x8xf32>
    %3 = vector.extract_strided_slice %0 {offsets = [0, 0, 0], sizes = [2, 16, 4], strides = [1, 1, 1]} : vector<2x18x4xf32> to vector<2x16x4xf32>
    %4 = vector.extract_strided_slice %0 {offsets = [0, 1, 0], sizes = [2, 16, 4], strides = [1, 1, 1]} : vector<2x18x4xf32> to vector<2x16x4xf32>
    %5 = vector.extract_strided_slice %0 {offsets = [0, 2, 0], sizes = [2, 16, 4], strides = [1, 1, 1]} : vector<2x18x4xf32> to vector<2x16x4xf32>
    %6 = tpu.concatenate %3, %4, %5 in 2 : vector<2x16x4xf32>, vector<2x16x4xf32>, vector<2x16x4xf32> -> vector<2x16x12xf32>
    %7 = vector.shape_cast %6 : vector<2x16x12xf32> to vector<32x12xf32>
    %cst = arith.constant dense<0.000000e+00> : vector<32x8xf32>
    %8 = tpu.matmul %7, %1, %cst {dimension_numbers = #tpu.dot_dimension_numbers<[1], [0], [0], [1], [0, 0, 1, 1], [], []>} : vector<32x12xf32>, vector<12x8xf32>, vector<32x8xf32> -> vector<32x8xf32>
    %9 = vector.broadcast %2 : vector<1x8xf32> to vector<32x8xf32>
    %10 = arith.addf %8, %9 : vector<32x8xf32>
    %cst_6 = arith.constant 0.000000e+00 : f32
    %11 = vector.broadcast %cst_6 : f32 to vector<32x8xf32>
    %12 = arith.maximumf %10, %11 : vector<32x8xf32>
    %13 = vector.shape_cast %12 : vector<32x8xf32> to vector<2x16x8xf32>
    %c0_7 = arith.constant 0 : index
    %c0_8 = arith.constant 0 : index
    %14 = vector.load %arg4[%c0_7, %c0_8] : memref<8x128xf32, #tpu.memory_space<vmem>>, vector<8x128xf32>
    %c0_9 = arith.constant 0 : index
    %c0_10 = arith.constant 0 : index
    %15 = vector.load %arg5[%c0_9, %c0_10] : memref<32x128xf32, #tpu.memory_space<vmem>>, vector<32x128xf32>
    %c0_11 = arith.constant 0 : index
    %c0_12 = arith.constant 0 : index
    %16 = vector.load %arg6[%c0_11, %c0_12] : memref<1x128xf32, #tpu.memory_space<vmem>>, vector<1x128xf32>
    %17 = vector.shape_cast %13 : vector<2x16x8xf32> to vector<32x8xf32>
    %cst_13 = arith.constant dense<0.000000e+00> : vector<32x128xf32>
    %18 = tpu.matmul %17, %14, %cst_13 {dimension_numbers = #tpu.dot_dimension_numbers<[1], [0], [0], [1], [0, 0, 1, 1], [], []>} : vector<32x8xf32>, vector<8x128xf32>, vector<32x128xf32> -> vector<32x128xf32>
    %19 = vector.broadcast %16 : vector<1x128xf32> to vector<32x128xf32>
    %20 = arith.addf %18, %19 : vector<32x128xf32>
    %21 = vector.shape_cast %20 : vector<32x128xf32> to vector<2x16x128xf32>
    %cst_14 = arith.constant 0.000000e+00 : f32
    %22 = vector.broadcast %cst_14 : f32 to vector<2x32xf32>
    %cst_15 = arith.constant 0.000000e+00 : f32
    %23 = vector.broadcast %cst_15 : f32 to vector<2x32xf32>
    %24 = vector.extract_strided_slice %21 {offsets = [0, 0, 0], sizes = [2, 1, 128], strides = [1, 1, 1]} : vector<2x16x128xf32> to vector<2x1x128xf32>
    %25 = vector.shape_cast %24 : vector<2x1x128xf32> to vector<2x128xf32>
    %cst_16 = arith.constant dense<0.000000e+00> : vector<2x128xf32>
    %26 = tpu.matmul %22, %15, %cst_16 {dimension_numbers = #tpu.dot_dimension_numbers<[1], [0], [0], [1], [0, 0, 1, 1], [], []>} : vector<2x32xf32>, vector<32x128xf32>, vector<2x128xf32> -> vector<2x128xf32>
    %27 = arith.addf %25, %26 : vector<2x128xf32>
    %28 = arith.negf %27 : vector<2x128xf32>
    %29 = math.exp %28 : vector<2x128xf32>
    %cst_17 = arith.constant 1.000000e+00 : f32
    %30 = vector.broadcast %cst_17 : f32 to vector<2x128xf32>
    %31 = arith.addf %30, %29 : vector<2x128xf32>
    %32 = arith.divf %30, %31 : vector<2x128xf32>
    %33 = math.tanh %27 : vector<2x128xf32>
    %34 = vector.extract_strided_slice %32 {offsets = [0, 0], sizes = [2, 32], strides = [1, 1]} : vector<2x128xf32> to vector<2x32xf32>
    %35 = vector.extract_strided_slice %32 {offsets = [0, 32], sizes = [2, 32], strides = [1, 1]} : vector<2x128xf32> to vector<2x32xf32>
    %36 = vector.extract_strided_slice %33 {offsets = [0, 64], sizes = [2, 32], strides = [1, 1]} : vector<2x128xf32> to vector<2x32xf32>
    %37 = vector.extract_strided_slice %32 {offsets = [0, 96], sizes = [2, 32], strides = [1, 1]} : vector<2x128xf32> to vector<2x32xf32>
    %38 = arith.mulf %35, %23 : vector<2x32xf32>
    %39 = arith.mulf %34, %36 : vector<2x32xf32>
    %40 = arith.addf %38, %39 : vector<2x32xf32>
    %41 = math.tanh %40 : vector<2x32xf32>
    %42 = arith.mulf %37, %41 : vector<2x32xf32>
    %c0_18 = arith.constant 0 : index
    %c0_19 = arith.constant 0 : index
    %c0_20 = arith.constant 0 : index
    %43 = vector.load %arg10[%c0_18, %c0_19, %c0_20] : memref<2x16x32xf32, #tpu.memory_space<vmem>>, vector<2x1x32xf32>
    %44 = vector.shape_cast %43 : vector<2x1x32xf32> to vector<2x32xf32>
    %45 = vector.shape_cast %42 : vector<2x32xf32> to vector<2x1x32xf32>
    tpu.vector_store %arg10[%c0_18, %c0_19, %c0_20], %45 {strides = array<i32>} : memref<2x16x32xf32, #tpu.memory_space<vmem>>, vector<2x1x32xf32>,
    %46 = vector.extract_strided_slice %21 {offsets = [0, 1, 0], sizes = [2, 1, 128], strides = [1, 1, 1]} : vector<2x16x128xf32> to vector<2x1x128xf32>
    %47 = vector.shape_cast %46 : vector<2x1x128xf32> to vector<2x128xf32>
    %cst_21 = arith.constant dense<0.000000e+00> : vector<2x128xf32>
    %48 = tpu.matmul %42, %15, %cst_21 {dimension_numbers = #tpu.dot_dimension_numbers<[1], [0], [0], [1], [0, 0, 1, 1], [], []>} : vector<2x32xf32>, vector<32x128xf32>, vector<2x128xf32> -> vector<2x128xf32>
    %49 = arith.addf %47, %48 : vector<2x128xf32>
    %50 = arith.negf %49 : vector<2x128xf32>
    %51 = math.exp %50 : vector<2x128xf32>
    %cst_22 = arith.constant 1.000000e+00 : f32
    %52 = vector.broadcast %cst_22 : f32 to vector<2x128xf32>
    %53 = arith.addf %52, %51 : vector<2x128xf32>
    %54 = arith.divf %52, %53 : vector<2x128xf32>
    %55 = math.tanh %49 : vector<2x128xf32>
    %56 = vector.extract_strided_slice %54 {offsets = [0, 0], sizes = [2, 32], strides = [1, 1]} : vector<2x128xf32> to vector<2x32xf32>
    %57 = vector.extract_strided_slice %54 {offsets = [0, 32], sizes = [2, 32], strides = [1, 1]} : vector<2x128xf32> to vector<2x32xf32>
    %58 = vector.extract_strided_slice %55 {offsets = [0, 64], sizes = [2, 32], strides = [1, 1]} : vector<2x128xf32> to vector<2x32xf32>
    %59 = vector.extract_strided_slice %54 {offsets = [0, 96], sizes = [2, 32], strides = [1, 1]} : vector<2x128xf32> to vector<2x32xf32>
    %60 = arith.mulf %57, %40 : vector<2x32xf32>
    %61 = arith.mulf %56, %58 : vector<2x32xf32>
    %62 = arith.addf %60, %61 : vector<2x32xf32>
    %63 = math.tanh %62 : vector<2x32xf32>
    %64 = arith.mulf %59, %63 : vector<2x32xf32>
    %c0_23 = arith.constant 0 : index
    %c1 = arith.constant 1 : index
    %c0_24 = arith.constant 0 : index
    %65 = vector.load %arg10[%c0_23, %c1, %c0_24] : memref<2x16x32xf32, #tpu.memory_space<vmem>>, vector<2x1x32xf32>
    %66 = vector.shape_cast %65 : vector<2x1x32xf32> to vector<2x32xf32>
    %67 = vector.shape_cast %64 : vector<2x32xf32> to vector<2x1x32xf32>
    tpu.vector_store %arg10[%c0_23, %c1, %c0_24], %67 {strides = array<i32>} : memref<2x16x32xf32, #tpu.memory_space<vmem>>, vector<2x1x32xf32>,
    %68 = vector.extract_strided_slice %21 {offsets = [0, 2, 0], sizes = [2, 1, 128], strides = [1, 1, 1]} : vector<2x16x128xf32> to vector<2x1x128xf32>
    %69 = vector.shape_cast %68 : vector<2x1x128xf32> to vector<2x128xf32>
    %cst_25 = arith.constant dense<0.000000e+00> : vector<2x128xf32>
    %70 = tpu.matmul %64, %15, %cst_25 {dimension_numbers = #tpu.dot_dimension_numbers<[1], [0], [0], [1], [0, 0, 1, 1], [], []>} : vector<2x32xf32>, vector<32x128xf32>, vector<2x128xf32> -> vector<2x128xf32>
    %71 = arith.addf %69, %70 : vector<2x128xf32>
    %72 = arith.negf %71 : vector<2x128xf32>
    %73 = math.exp %72 : vector<2x128xf32>
    %cst_26 = arith.constant 1.000000e+00 : f32
    %74 = vector.broadcast %cst_26 : f32 to vector<2x128xf32>
    %75 = arith.addf %74, %73 : vector<2x128xf32>
    %76 = arith.divf %74, %75 : vector<2x128xf32>
    %77 = math.tanh %71 : vector<2x128xf32>
    %78 = vector.extract_strided_slice %76 {offsets = [0, 0], sizes = [2, 32], strides = [1, 1]} : vector<2x128xf32> to vector<2x32xf32>
    %79 = vector.extract_strided_slice %76 {offsets = [0, 32], sizes = [2, 32], strides = [1, 1]} : vector<2x128xf32> to vector<2x32xf32>
    %80 = vector.extract_strided_slice %77 {offsets = [0, 64], sizes = [2, 32], strides = [1, 1]} : vector<2x128xf32> to vector<2x32xf32>
    %81 = vector.extract_strided_slice %76 {offsets = [0, 96], sizes = [2, 32], strides = [1, 1]} : vector<2x128xf32> to vector<2x32xf32>
    %82 = arith.mulf %79, %62 : vector<2x32xf32>
    %83 = arith.mulf %78, %80 : vector<2x32xf32>
    %84 = arith.addf %82, %83 : vector<2x32xf32>
    %85 = math.tanh %84 : vector<2x32xf32>
    %86 = arith.mulf %81, %85 : vector<2x32xf32>
    %c0_27 = arith.constant 0 : index
    %c2 = arith.constant 2 : index
    %c0_28 = arith.constant 0 : index
    %87 = vector.load %arg10[%c0_27, %c2, %c0_28] : memref<2x16x32xf32, #tpu.memory_space<vmem>>, vector<2x1x32xf32>
    %88 = vector.shape_cast %87 : vector<2x1x32xf32> to vector<2x32xf32>
    %89 = vector.shape_cast %86 : vector<2x32xf32> to vector<2x1x32xf32>
    tpu.vector_store %arg10[%c0_27, %c2, %c0_28], %89 {strides = array<i32>} : memref<2x16x32xf32, #tpu.memory_space<vmem>>, vector<2x1x32xf32>,
    %90 = vector.extract_strided_slice %21 {offsets = [0, 3, 0], sizes = [2, 1, 128], strides = [1, 1, 1]} : vector<2x16x128xf32> to vector<2x1x128xf32>
    %91 = vector.shape_cast %90 : vector<2x1x128xf32> to vector<2x128xf32>
    %cst_29 = arith.constant dense<0.000000e+00> : vector<2x128xf32>
    %92 = tpu.matmul %86, %15, %cst_29 {dimension_numbers = #tpu.dot_dimension_numbers<[1], [0], [0], [1], [0, 0, 1, 1], [], []>} : vector<2x32xf32>, vector<32x128xf32>, vector<2x128xf32> -> vector<2x128xf32>
    %93 = arith.addf %91, %92 : vector<2x128xf32>
    %94 = arith.negf %93 : vector<2x128xf32>
    %95 = math.exp %94 : vector<2x128xf32>
    %cst_30 = arith.constant 1.000000e+00 : f32
    %96 = vector.broadcast %cst_30 : f32 to vector<2x128xf32>
    %97 = arith.addf %96, %95 : vector<2x128xf32>
    %98 = arith.divf %96, %97 : vector<2x128xf32>
    %99 = math.tanh %93 : vector<2x128xf32>
    %100 = vector.extract_strided_slice %98 {offsets = [0, 0], sizes = [2, 32], strides = [1, 1]} : vector<2x128xf32> to vector<2x32xf32>
    %101 = vector.extract_strided_slice %98 {offsets = [0, 32], sizes = [2, 32], strides = [1, 1]} : vector<2x128xf32> to vector<2x32xf32>
    %102 = vector.extract_strided_slice %99 {offsets = [0, 64], sizes = [2, 32], strides = [1, 1]} : vector<2x128xf32> to vector<2x32xf32>
    %103 = vector.extract_strided_slice %98 {offsets = [0, 96], sizes = [2, 32], strides = [1, 1]} : vector<2x128xf32> to vector<2x32xf32>
    %104 = arith.mulf %101, %84 : vector<2x32xf32>
    %105 = arith.mulf %100, %102 : vector<2x32xf32>
    %106 = arith.addf %104, %105 : vector<2x32xf32>
    %107 = math.tanh %106 : vector<2x32xf32>
    %108 = arith.mulf %103, %107 : vector<2x32xf32>
    %c0_31 = arith.constant 0 : index
    %c3 = arith.constant 3 : index
    %c0_32 = arith.constant 0 : index
    %109 = vector.load %arg10[%c0_31, %c3, %c0_32] : memref<2x16x32xf32, #tpu.memory_space<vmem>>, vector<2x1x32xf32>
    %110 = vector.shape_cast %109 : vector<2x1x32xf32> to vector<2x32xf32>
    %111 = vector.shape_cast %108 : vector<2x32xf32> to vector<2x1x32xf32>
    tpu.vector_store %arg10[%c0_31, %c3, %c0_32], %111 {strides = array<i32>} : memref<2x16x32xf32, #tpu.memory_space<vmem>>, vector<2x1x32xf32>,
    %112 = vector.extract_strided_slice %21 {offsets = [0, 4, 0], sizes = [2, 1, 128], strides = [1, 1, 1]} : vector<2x16x128xf32> to vector<2x1x128xf32>
    %113 = vector.shape_cast %112 : vector<2x1x128xf32> to vector<2x128xf32>
    %cst_33 = arith.constant dense<0.000000e+00> : vector<2x128xf32>
    %114 = tpu.matmul %108, %15, %cst_33 {dimension_numbers = #tpu.dot_dimension_numbers<[1], [0], [0], [1], [0, 0, 1, 1], [], []>} : vector<2x32xf32>, vector<32x128xf32>, vector<2x128xf32> -> vector<2x128xf32>
    %115 = arith.addf %113, %114 : vector<2x128xf32>
    %116 = arith.negf %115 : vector<2x128xf32>
    %117 = math.exp %116 : vector<2x128xf32>
    %cst_34 = arith.constant 1.000000e+00 : f32
    %118 = vector.broadcast %cst_34 : f32 to vector<2x128xf32>
    %119 = arith.addf %118, %117 : vector<2x128xf32>
    %120 = arith.divf %118, %119 : vector<2x128xf32>
    %121 = math.tanh %115 : vector<2x128xf32>
    %122 = vector.extract_strided_slice %120 {offsets = [0, 0], sizes = [2, 32], strides = [1, 1]} : vector<2x128xf32> to vector<2x32xf32>
    %123 = vector.extract_strided_slice %120 {offsets = [0, 32], sizes = [2, 32], strides = [1, 1]} : vector<2x128xf32> to vector<2x32xf32>
    %124 = vector.extract_strided_slice %121 {offsets = [0, 64], sizes = [2, 32], strides = [1, 1]} : vector<2x128xf32> to vector<2x32xf32>
    %125 = vector.extract_strided_slice %120 {offsets = [0, 96], sizes = [2, 32], strides = [1, 1]} : vector<2x128xf32> to vector<2x32xf32>
    %126 = arith.mulf %123, %106 : vector<2x32xf32>
    %127 = arith.mulf %122, %124 : vector<2x32xf32>
    %128 = arith.addf %126, %127 : vector<2x32xf32>
    %129 = math.tanh %128 : vector<2x32xf32>
    %130 = arith.mulf %125, %129 : vector<2x32xf32>
    %c0_35 = arith.constant 0 : index
    %c4 = arith.constant 4 : index
    %c0_36 = arith.constant 0 : index
    %131 = vector.load %arg10[%c0_35, %c4, %c0_36] : memref<2x16x32xf32, #tpu.memory_space<vmem>>, vector<2x1x32xf32>
    %132 = vector.shape_cast %131 : vector<2x1x32xf32> to vector<2x32xf32>
    %133 = vector.shape_cast %130 : vector<2x32xf32> to vector<2x1x32xf32>
    tpu.vector_store %arg10[%c0_35, %c4, %c0_36], %133 {strides = array<i32>} : memref<2x16x32xf32, #tpu.memory_space<vmem>>, vector<2x1x32xf32>,
    %134 = vector.extract_strided_slice %21 {offsets = [0, 5, 0], sizes = [2, 1, 128], strides = [1, 1, 1]} : vector<2x16x128xf32> to vector<2x1x128xf32>
    %135 = vector.shape_cast %134 : vector<2x1x128xf32> to vector<2x128xf32>
    %cst_37 = arith.constant dense<0.000000e+00> : vector<2x128xf32>
    %136 = tpu.matmul %130, %15, %cst_37 {dimension_numbers = #tpu.dot_dimension_numbers<[1], [0], [0], [1], [0, 0, 1, 1], [], []>} : vector<2x32xf32>, vector<32x128xf32>, vector<2x128xf32> -> vector<2x128xf32>
    %137 = arith.addf %135, %136 : vector<2x128xf32>
    %138 = arith.negf %137 : vector<2x128xf32>
    %139 = math.exp %138 : vector<2x128xf32>
    %cst_38 = arith.constant 1.000000e+00 : f32
    %140 = vector.broadcast %cst_38 : f32 to vector<2x128xf32>
    %141 = arith.addf %140, %139 : vector<2x128xf32>
    %142 = arith.divf %140, %141 : vector<2x128xf32>
    %143 = math.tanh %137 : vector<2x128xf32>
    %144 = vector.extract_strided_slice %142 {offsets = [0, 0], sizes = [2, 32], strides = [1, 1]} : vector<2x128xf32> to vector<2x32xf32>
    %145 = vector.extract_strided_slice %142 {offsets = [0, 32], sizes = [2, 32], strides = [1, 1]} : vector<2x128xf32> to vector<2x32xf32>
    %146 = vector.extract_strided_slice %143 {offsets = [0, 64], sizes = [2, 32], strides = [1, 1]} : vector<2x128xf32> to vector<2x32xf32>
    %147 = vector.extract_strided_slice %142 {offsets = [0, 96], sizes = [2, 32], strides = [1, 1]} : vector<2x128xf32> to vector<2x32xf32>
    %148 = arith.mulf %145, %128 : vector<2x32xf32>
    %149 = arith.mulf %144, %146 : vector<2x32xf32>
    %150 = arith.addf %148, %149 : vector<2x32xf32>
    %151 = math.tanh %150 : vector<2x32xf32>
    %152 = arith.mulf %147, %151 : vector<2x32xf32>
    %c0_39 = arith.constant 0 : index
    %c5 = arith.constant 5 : index
    %c0_40 = arith.constant 0 : index
    %153 = vector.load %arg10[%c0_39, %c5, %c0_40] : memref<2x16x32xf32, #tpu.memory_space<vmem>>, vector<2x1x32xf32>
    %154 = vector.shape_cast %153 : vector<2x1x32xf32> to vector<2x32xf32>
    %155 = vector.shape_cast %152 : vector<2x32xf32> to vector<2x1x32xf32>
    tpu.vector_store %arg10[%c0_39, %c5, %c0_40], %155 {strides = array<i32>} : memref<2x16x32xf32, #tpu.memory_space<vmem>>, vector<2x1x32xf32>,
    %156 = vector.extract_strided_slice %21 {offsets = [0, 6, 0], sizes = [2, 1, 128], strides = [1, 1, 1]} : vector<2x16x128xf32> to vector<2x1x128xf32>
    %157 = vector.shape_cast %156 : vector<2x1x128xf32> to vector<2x128xf32>
    %cst_41 = arith.constant dense<0.000000e+00> : vector<2x128xf32>
    %158 = tpu.matmul %152, %15, %cst_41 {dimension_numbers = #tpu.dot_dimension_numbers<[1], [0], [0], [1], [0, 0, 1, 1], [], []>} : vector<2x32xf32>, vector<32x128xf32>, vector<2x128xf32> -> vector<2x128xf32>
    %159 = arith.addf %157, %158 : vector<2x128xf32>
    %160 = arith.negf %159 : vector<2x128xf32>
    %161 = math.exp %160 : vector<2x128xf32>
    %cst_42 = arith.constant 1.000000e+00 : f32
    %162 = vector.broadcast %cst_42 : f32 to vector<2x128xf32>
    %163 = arith.addf %162, %161 : vector<2x128xf32>
    %164 = arith.divf %162, %163 : vector<2x128xf32>
    %165 = math.tanh %159 : vector<2x128xf32>
    %166 = vector.extract_strided_slice %164 {offsets = [0, 0], sizes = [2, 32], strides = [1, 1]} : vector<2x128xf32> to vector<2x32xf32>
    %167 = vector.extract_strided_slice %164 {offsets = [0, 32], sizes = [2, 32], strides = [1, 1]} : vector<2x128xf32> to vector<2x32xf32>
    %168 = vector.extract_strided_slice %165 {offsets = [0, 64], sizes = [2, 32], strides = [1, 1]} : vector<2x128xf32> to vector<2x32xf32>
    %169 = vector.extract_strided_slice %164 {offsets = [0, 96], sizes = [2, 32], strides = [1, 1]} : vector<2x128xf32> to vector<2x32xf32>
    %170 = arith.mulf %167, %150 : vector<2x32xf32>
    %171 = arith.mulf %166, %168 : vector<2x32xf32>
    %172 = arith.addf %170, %171 : vector<2x32xf32>
    %173 = math.tanh %172 : vector<2x32xf32>
    %174 = arith.mulf %169, %173 : vector<2x32xf32>
    %c0_43 = arith.constant 0 : index
    %c6 = arith.constant 6 : index
    %c0_44 = arith.constant 0 : index
    %175 = vector.load %arg10[%c0_43, %c6, %c0_44] : memref<2x16x32xf32, #tpu.memory_space<vmem>>, vector<2x1x32xf32>
    %176 = vector.shape_cast %175 : vector<2x1x32xf32> to vector<2x32xf32>
    %177 = vector.shape_cast %174 : vector<2x32xf32> to vector<2x1x32xf32>
    tpu.vector_store %arg10[%c0_43, %c6, %c0_44], %177 {strides = array<i32>} : memref<2x16x32xf32, #tpu.memory_space<vmem>>, vector<2x1x32xf32>,
    %178 = vector.extract_strided_slice %21 {offsets = [0, 7, 0], sizes = [2, 1, 128], strides = [1, 1, 1]} : vector<2x16x128xf32> to vector<2x1x128xf32>
    %179 = vector.shape_cast %178 : vector<2x1x128xf32> to vector<2x128xf32>
    %cst_45 = arith.constant dense<0.000000e+00> : vector<2x128xf32>
    %180 = tpu.matmul %174, %15, %cst_45 {dimension_numbers = #tpu.dot_dimension_numbers<[1], [0], [0], [1], [0, 0, 1, 1], [], []>} : vector<2x32xf32>, vector<32x128xf32>, vector<2x128xf32> -> vector<2x128xf32>
    %181 = arith.addf %179, %180 : vector<2x128xf32>
    %182 = arith.negf %181 : vector<2x128xf32>
    %183 = math.exp %182 : vector<2x128xf32>
    %cst_46 = arith.constant 1.000000e+00 : f32
    %184 = vector.broadcast %cst_46 : f32 to vector<2x128xf32>
    %185 = arith.addf %184, %183 : vector<2x128xf32>
    %186 = arith.divf %184, %185 : vector<2x128xf32>
    %187 = math.tanh %181 : vector<2x128xf32>
    %188 = vector.extract_strided_slice %186 {offsets = [0, 0], sizes = [2, 32], strides = [1, 1]} : vector<2x128xf32> to vector<2x32xf32>
    %189 = vector.extract_strided_slice %186 {offsets = [0, 32], sizes = [2, 32], strides = [1, 1]} : vector<2x128xf32> to vector<2x32xf32>
    %190 = vector.extract_strided_slice %187 {offsets = [0, 64], sizes = [2, 32], strides = [1, 1]} : vector<2x128xf32> to vector<2x32xf32>
    %191 = vector.extract_strided_slice %186 {offsets = [0, 96], sizes = [2, 32], strides = [1, 1]} : vector<2x128xf32> to vector<2x32xf32>
    %192 = arith.mulf %189, %172 : vector<2x32xf32>
    %193 = arith.mulf %188, %190 : vector<2x32xf32>
    %194 = arith.addf %192, %193 : vector<2x32xf32>
    %195 = math.tanh %194 : vector<2x32xf32>
    %196 = arith.mulf %191, %195 : vector<2x32xf32>
    %c0_47 = arith.constant 0 : index
    %c7 = arith.constant 7 : index
    %c0_48 = arith.constant 0 : index
    %197 = vector.load %arg10[%c0_47, %c7, %c0_48] : memref<2x16x32xf32, #tpu.memory_space<vmem>>, vector<2x1x32xf32>
    %198 = vector.shape_cast %197 : vector<2x1x32xf32> to vector<2x32xf32>
    %199 = vector.shape_cast %196 : vector<2x32xf32> to vector<2x1x32xf32>
    tpu.vector_store %arg10[%c0_47, %c7, %c0_48], %199 {strides = array<i32>} : memref<2x16x32xf32, #tpu.memory_space<vmem>>, vector<2x1x32xf32>,
    %200 = vector.extract_strided_slice %21 {offsets = [0, 8, 0], sizes = [2, 1, 128], strides = [1, 1, 1]} : vector<2x16x128xf32> to vector<2x1x128xf32>
    %201 = vector.shape_cast %200 : vector<2x1x128xf32> to vector<2x128xf32>
    %cst_49 = arith.constant dense<0.000000e+00> : vector<2x128xf32>
    %202 = tpu.matmul %196, %15, %cst_49 {dimension_numbers = #tpu.dot_dimension_numbers<[1], [0], [0], [1], [0, 0, 1, 1], [], []>} : vector<2x32xf32>, vector<32x128xf32>, vector<2x128xf32> -> vector<2x128xf32>
    %203 = arith.addf %201, %202 : vector<2x128xf32>
    %204 = arith.negf %203 : vector<2x128xf32>
    %205 = math.exp %204 : vector<2x128xf32>
    %cst_50 = arith.constant 1.000000e+00 : f32
    %206 = vector.broadcast %cst_50 : f32 to vector<2x128xf32>
    %207 = arith.addf %206, %205 : vector<2x128xf32>
    %208 = arith.divf %206, %207 : vector<2x128xf32>
    %209 = math.tanh %203 : vector<2x128xf32>
    %210 = vector.extract_strided_slice %208 {offsets = [0, 0], sizes = [2, 32], strides = [1, 1]} : vector<2x128xf32> to vector<2x32xf32>
    %211 = vector.extract_strided_slice %208 {offsets = [0, 32], sizes = [2, 32], strides = [1, 1]} : vector<2x128xf32> to vector<2x32xf32>
    %212 = vector.extract_strided_slice %209 {offsets = [0, 64], sizes = [2, 32], strides = [1, 1]} : vector<2x128xf32> to vector<2x32xf32>
    %213 = vector.extract_strided_slice %208 {offsets = [0, 96], sizes = [2, 32], strides = [1, 1]} : vector<2x128xf32> to vector<2x32xf32>
    %214 = arith.mulf %211, %194 : vector<2x32xf32>
    %215 = arith.mulf %210, %212 : vector<2x32xf32>
    %216 = arith.addf %214, %215 : vector<2x32xf32>
    %217 = math.tanh %216 : vector<2x32xf32>
    %218 = arith.mulf %213, %217 : vector<2x32xf32>
    %c0_51 = arith.constant 0 : index
    %c8 = arith.constant 8 : index
    %c0_52 = arith.constant 0 : index
    %219 = vector.load %arg10[%c0_51, %c8, %c0_52] : memref<2x16x32xf32, #tpu.memory_space<vmem>>, vector<2x1x32xf32>
    %220 = vector.shape_cast %219 : vector<2x1x32xf32> to vector<2x32xf32>
    %221 = vector.shape_cast %218 : vector<2x32xf32> to vector<2x1x32xf32>
    tpu.vector_store %arg10[%c0_51, %c8, %c0_52], %221 {strides = array<i32>} : memref<2x16x32xf32, #tpu.memory_space<vmem>>, vector<2x1x32xf32>,
    %222 = vector.extract_strided_slice %21 {offsets = [0, 9, 0], sizes = [2, 1, 128], strides = [1, 1, 1]} : vector<2x16x128xf32> to vector<2x1x128xf32>
    %223 = vector.shape_cast %222 : vector<2x1x128xf32> to vector<2x128xf32>
    %cst_53 = arith.constant dense<0.000000e+00> : vector<2x128xf32>
    %224 = tpu.matmul %218, %15, %cst_53 {dimension_numbers = #tpu.dot_dimension_numbers<[1], [0], [0], [1], [0, 0, 1, 1], [], []>} : vector<2x32xf32>, vector<32x128xf32>, vector<2x128xf32> -> vector<2x128xf32>
    %225 = arith.addf %223, %224 : vector<2x128xf32>
    %226 = arith.negf %225 : vector<2x128xf32>
    %227 = math.exp %226 : vector<2x128xf32>
    %cst_54 = arith.constant 1.000000e+00 : f32
    %228 = vector.broadcast %cst_54 : f32 to vector<2x128xf32>
    %229 = arith.addf %228, %227 : vector<2x128xf32>
    %230 = arith.divf %228, %229 : vector<2x128xf32>
    %231 = math.tanh %225 : vector<2x128xf32>
    %232 = vector.extract_strided_slice %230 {offsets = [0, 0], sizes = [2, 32], strides = [1, 1]} : vector<2x128xf32> to vector<2x32xf32>
    %233 = vector.extract_strided_slice %230 {offsets = [0, 32], sizes = [2, 32], strides = [1, 1]} : vector<2x128xf32> to vector<2x32xf32>
    %234 = vector.extract_strided_slice %231 {offsets = [0, 64], sizes = [2, 32], strides = [1, 1]} : vector<2x128xf32> to vector<2x32xf32>
    %235 = vector.extract_strided_slice %230 {offsets = [0, 96], sizes = [2, 32], strides = [1, 1]} : vector<2x128xf32> to vector<2x32xf32>
    %236 = arith.mulf %233, %216 : vector<2x32xf32>
    %237 = arith.mulf %232, %234 : vector<2x32xf32>
    %238 = arith.addf %236, %237 : vector<2x32xf32>
    %239 = math.tanh %238 : vector<2x32xf32>
    %240 = arith.mulf %235, %239 : vector<2x32xf32>
    %c0_55 = arith.constant 0 : index
    %c9 = arith.constant 9 : index
    %c0_56 = arith.constant 0 : index
    %241 = vector.load %arg10[%c0_55, %c9, %c0_56] : memref<2x16x32xf32, #tpu.memory_space<vmem>>, vector<2x1x32xf32>
    %242 = vector.shape_cast %241 : vector<2x1x32xf32> to vector<2x32xf32>
    %243 = vector.shape_cast %240 : vector<2x32xf32> to vector<2x1x32xf32>
    tpu.vector_store %arg10[%c0_55, %c9, %c0_56], %243 {strides = array<i32>} : memref<2x16x32xf32, #tpu.memory_space<vmem>>, vector<2x1x32xf32>,
    %244 = vector.extract_strided_slice %21 {offsets = [0, 10, 0], sizes = [2, 1, 128], strides = [1, 1, 1]} : vector<2x16x128xf32> to vector<2x1x128xf32>
    %245 = vector.shape_cast %244 : vector<2x1x128xf32> to vector<2x128xf32>
    %cst_57 = arith.constant dense<0.000000e+00> : vector<2x128xf32>
    %246 = tpu.matmul %240, %15, %cst_57 {dimension_numbers = #tpu.dot_dimension_numbers<[1], [0], [0], [1], [0, 0, 1, 1], [], []>} : vector<2x32xf32>, vector<32x128xf32>, vector<2x128xf32> -> vector<2x128xf32>
    %247 = arith.addf %245, %246 : vector<2x128xf32>
    %248 = arith.negf %247 : vector<2x128xf32>
    %249 = math.exp %248 : vector<2x128xf32>
    %cst_58 = arith.constant 1.000000e+00 : f32
    %250 = vector.broadcast %cst_58 : f32 to vector<2x128xf32>
    %251 = arith.addf %250, %249 : vector<2x128xf32>
    %252 = arith.divf %250, %251 : vector<2x128xf32>
    %253 = math.tanh %247 : vector<2x128xf32>
    %254 = vector.extract_strided_slice %252 {offsets = [0, 0], sizes = [2, 32], strides = [1, 1]} : vector<2x128xf32> to vector<2x32xf32>
    %255 = vector.extract_strided_slice %252 {offsets = [0, 32], sizes = [2, 32], strides = [1, 1]} : vector<2x128xf32> to vector<2x32xf32>
    %256 = vector.extract_strided_slice %253 {offsets = [0, 64], sizes = [2, 32], strides = [1, 1]} : vector<2x128xf32> to vector<2x32xf32>
    %257 = vector.extract_strided_slice %252 {offsets = [0, 96], sizes = [2, 32], strides = [1, 1]} : vector<2x128xf32> to vector<2x32xf32>
    %258 = arith.mulf %255, %238 : vector<2x32xf32>
    %259 = arith.mulf %254, %256 : vector<2x32xf32>
    %260 = arith.addf %258, %259 : vector<2x32xf32>
    %261 = math.tanh %260 : vector<2x32xf32>
    %262 = arith.mulf %257, %261 : vector<2x32xf32>
    %c0_59 = arith.constant 0 : index
    %c10 = arith.constant 10 : index
    %c0_60 = arith.constant 0 : index
    %263 = vector.load %arg10[%c0_59, %c10, %c0_60] : memref<2x16x32xf32, #tpu.memory_space<vmem>>, vector<2x1x32xf32>
    %264 = vector.shape_cast %263 : vector<2x1x32xf32> to vector<2x32xf32>
    %265 = vector.shape_cast %262 : vector<2x32xf32> to vector<2x1x32xf32>
    tpu.vector_store %arg10[%c0_59, %c10, %c0_60], %265 {strides = array<i32>} : memref<2x16x32xf32, #tpu.memory_space<vmem>>, vector<2x1x32xf32>,
    %266 = vector.extract_strided_slice %21 {offsets = [0, 11, 0], sizes = [2, 1, 128], strides = [1, 1, 1]} : vector<2x16x128xf32> to vector<2x1x128xf32>
    %267 = vector.shape_cast %266 : vector<2x1x128xf32> to vector<2x128xf32>
    %cst_61 = arith.constant dense<0.000000e+00> : vector<2x128xf32>
    %268 = tpu.matmul %262, %15, %cst_61 {dimension_numbers = #tpu.dot_dimension_numbers<[1], [0], [0], [1], [0, 0, 1, 1], [], []>} : vector<2x32xf32>, vector<32x128xf32>, vector<2x128xf32> -> vector<2x128xf32>
    %269 = arith.addf %267, %268 : vector<2x128xf32>
    %270 = arith.negf %269 : vector<2x128xf32>
    %271 = math.exp %270 : vector<2x128xf32>
    %cst_62 = arith.constant 1.000000e+00 : f32
    %272 = vector.broadcast %cst_62 : f32 to vector<2x128xf32>
    %273 = arith.addf %272, %271 : vector<2x128xf32>
    %274 = arith.divf %272, %273 : vector<2x128xf32>
    %275 = math.tanh %269 : vector<2x128xf32>
    %276 = vector.extract_strided_slice %274 {offsets = [0, 0], sizes = [2, 32], strides = [1, 1]} : vector<2x128xf32> to vector<2x32xf32>
    %277 = vector.extract_strided_slice %274 {offsets = [0, 32], sizes = [2, 32], strides = [1, 1]} : vector<2x128xf32> to vector<2x32xf32>
    %278 = vector.extract_strided_slice %275 {offsets = [0, 64], sizes = [2, 32], strides = [1, 1]} : vector<2x128xf32> to vector<2x32xf32>
    %279 = vector.extract_strided_slice %274 {offsets = [0, 96], sizes = [2, 32], strides = [1, 1]} : vector<2x128xf32> to vector<2x32xf32>
    %280 = arith.mulf %277, %260 : vector<2x32xf32>
    %281 = arith.mulf %276, %278 : vector<2x32xf32>
    %282 = arith.addf %280, %281 : vector<2x32xf32>
    %283 = math.tanh %282 : vector<2x32xf32>
    %284 = arith.mulf %279, %283 : vector<2x32xf32>
    %c0_63 = arith.constant 0 : index
    %c11 = arith.constant 11 : index
    %c0_64 = arith.constant 0 : index
    %285 = vector.load %arg10[%c0_63, %c11, %c0_64] : memref<2x16x32xf32, #tpu.memory_space<vmem>>, vector<2x1x32xf32>
    %286 = vector.shape_cast %285 : vector<2x1x32xf32> to vector<2x32xf32>
    %287 = vector.shape_cast %284 : vector<2x32xf32> to vector<2x1x32xf32>
    tpu.vector_store %arg10[%c0_63, %c11, %c0_64], %287 {strides = array<i32>} : memref<2x16x32xf32, #tpu.memory_space<vmem>>, vector<2x1x32xf32>,
    %288 = vector.extract_strided_slice %21 {offsets = [0, 12, 0], sizes = [2, 1, 128], strides = [1, 1, 1]} : vector<2x16x128xf32> to vector<2x1x128xf32>
    %289 = vector.shape_cast %288 : vector<2x1x128xf32> to vector<2x128xf32>
    %cst_65 = arith.constant dense<0.000000e+00> : vector<2x128xf32>
    %290 = tpu.matmul %284, %15, %cst_65 {dimension_numbers = #tpu.dot_dimension_numbers<[1], [0], [0], [1], [0, 0, 1, 1], [], []>} : vector<2x32xf32>, vector<32x128xf32>, vector<2x128xf32> -> vector<2x128xf32>
    %291 = arith.addf %289, %290 : vector<2x128xf32>
    %292 = arith.negf %291 : vector<2x128xf32>
    %293 = math.exp %292 : vector<2x128xf32>
    %cst_66 = arith.constant 1.000000e+00 : f32
    %294 = vector.broadcast %cst_66 : f32 to vector<2x128xf32>
    %295 = arith.addf %294, %293 : vector<2x128xf32>
    %296 = arith.divf %294, %295 : vector<2x128xf32>
    %297 = math.tanh %291 : vector<2x128xf32>
    %298 = vector.extract_strided_slice %296 {offsets = [0, 0], sizes = [2, 32], strides = [1, 1]} : vector<2x128xf32> to vector<2x32xf32>
    %299 = vector.extract_strided_slice %296 {offsets = [0, 32], sizes = [2, 32], strides = [1, 1]} : vector<2x128xf32> to vector<2x32xf32>
    %300 = vector.extract_strided_slice %297 {offsets = [0, 64], sizes = [2, 32], strides = [1, 1]} : vector<2x128xf32> to vector<2x32xf32>
    %301 = vector.extract_strided_slice %296 {offsets = [0, 96], sizes = [2, 32], strides = [1, 1]} : vector<2x128xf32> to vector<2x32xf32>
    %302 = arith.mulf %299, %282 : vector<2x32xf32>
    %303 = arith.mulf %298, %300 : vector<2x32xf32>
    %304 = arith.addf %302, %303 : vector<2x32xf32>
    %305 = math.tanh %304 : vector<2x32xf32>
    %306 = arith.mulf %301, %305 : vector<2x32xf32>
    %c0_67 = arith.constant 0 : index
    %c12 = arith.constant 12 : index
    %c0_68 = arith.constant 0 : index
    %307 = vector.load %arg10[%c0_67, %c12, %c0_68] : memref<2x16x32xf32, #tpu.memory_space<vmem>>, vector<2x1x32xf32>
    %308 = vector.shape_cast %307 : vector<2x1x32xf32> to vector<2x32xf32>
    %309 = vector.shape_cast %306 : vector<2x32xf32> to vector<2x1x32xf32>
    tpu.vector_store %arg10[%c0_67, %c12, %c0_68], %309 {strides = array<i32>} : memref<2x16x32xf32, #tpu.memory_space<vmem>>, vector<2x1x32xf32>,
    %310 = vector.extract_strided_slice %21 {offsets = [0, 13, 0], sizes = [2, 1, 128], strides = [1, 1, 1]} : vector<2x16x128xf32> to vector<2x1x128xf32>
    %311 = vector.shape_cast %310 : vector<2x1x128xf32> to vector<2x128xf32>
    %cst_69 = arith.constant dense<0.000000e+00> : vector<2x128xf32>
    %312 = tpu.matmul %306, %15, %cst_69 {dimension_numbers = #tpu.dot_dimension_numbers<[1], [0], [0], [1], [0, 0, 1, 1], [], []>} : vector<2x32xf32>, vector<32x128xf32>, vector<2x128xf32> -> vector<2x128xf32>
    %313 = arith.addf %311, %312 : vector<2x128xf32>
    %314 = arith.negf %313 : vector<2x128xf32>
    %315 = math.exp %314 : vector<2x128xf32>
    %cst_70 = arith.constant 1.000000e+00 : f32
    %316 = vector.broadcast %cst_70 : f32 to vector<2x128xf32>
    %317 = arith.addf %316, %315 : vector<2x128xf32>
    %318 = arith.divf %316, %317 : vector<2x128xf32>
    %319 = math.tanh %313 : vector<2x128xf32>
    %320 = vector.extract_strided_slice %318 {offsets = [0, 0], sizes = [2, 32], strides = [1, 1]} : vector<2x128xf32> to vector<2x32xf32>
    %321 = vector.extract_strided_slice %318 {offsets = [0, 32], sizes = [2, 32], strides = [1, 1]} : vector<2x128xf32> to vector<2x32xf32>
    %322 = vector.extract_strided_slice %319 {offsets = [0, 64], sizes = [2, 32], strides = [1, 1]} : vector<2x128xf32> to vector<2x32xf32>
    %323 = vector.extract_strided_slice %318 {offsets = [0, 96], sizes = [2, 32], strides = [1, 1]} : vector<2x128xf32> to vector<2x32xf32>
    %324 = arith.mulf %321, %304 : vector<2x32xf32>
    %325 = arith.mulf %320, %322 : vector<2x32xf32>
    %326 = arith.addf %324, %325 : vector<2x32xf32>
    %327 = math.tanh %326 : vector<2x32xf32>
    %328 = arith.mulf %323, %327 : vector<2x32xf32>
    %c0_71 = arith.constant 0 : index
    %c13 = arith.constant 13 : index
    %c0_72 = arith.constant 0 : index
    %329 = vector.load %arg10[%c0_71, %c13, %c0_72] : memref<2x16x32xf32, #tpu.memory_space<vmem>>, vector<2x1x32xf32>
    %330 = vector.shape_cast %329 : vector<2x1x32xf32> to vector<2x32xf32>
    %331 = vector.shape_cast %328 : vector<2x32xf32> to vector<2x1x32xf32>
    tpu.vector_store %arg10[%c0_71, %c13, %c0_72], %331 {strides = array<i32>} : memref<2x16x32xf32, #tpu.memory_space<vmem>>, vector<2x1x32xf32>,
    %332 = vector.extract_strided_slice %21 {offsets = [0, 14, 0], sizes = [2, 1, 128], strides = [1, 1, 1]} : vector<2x16x128xf32> to vector<2x1x128xf32>
    %333 = vector.shape_cast %332 : vector<2x1x128xf32> to vector<2x128xf32>
    %cst_73 = arith.constant dense<0.000000e+00> : vector<2x128xf32>
    %334 = tpu.matmul %328, %15, %cst_73 {dimension_numbers = #tpu.dot_dimension_numbers<[1], [0], [0], [1], [0, 0, 1, 1], [], []>} : vector<2x32xf32>, vector<32x128xf32>, vector<2x128xf32> -> vector<2x128xf32>
    %335 = arith.addf %333, %334 : vector<2x128xf32>
    %336 = arith.negf %335 : vector<2x128xf32>
    %337 = math.exp %336 : vector<2x128xf32>
    %cst_74 = arith.constant 1.000000e+00 : f32
    %338 = vector.broadcast %cst_74 : f32 to vector<2x128xf32>
    %339 = arith.addf %338, %337 : vector<2x128xf32>
    %340 = arith.divf %338, %339 : vector<2x128xf32>
    %341 = math.tanh %335 : vector<2x128xf32>
    %342 = vector.extract_strided_slice %340 {offsets = [0, 0], sizes = [2, 32], strides = [1, 1]} : vector<2x128xf32> to vector<2x32xf32>
    %343 = vector.extract_strided_slice %340 {offsets = [0, 32], sizes = [2, 32], strides = [1, 1]} : vector<2x128xf32> to vector<2x32xf32>
    %344 = vector.extract_strided_slice %341 {offsets = [0, 64], sizes = [2, 32], strides = [1, 1]} : vector<2x128xf32> to vector<2x32xf32>
    %345 = vector.extract_strided_slice %340 {offsets = [0, 96], sizes = [2, 32], strides = [1, 1]} : vector<2x128xf32> to vector<2x32xf32>
    %346 = arith.mulf %343, %326 : vector<2x32xf32>
    %347 = arith.mulf %342, %344 : vector<2x32xf32>
    %348 = arith.addf %346, %347 : vector<2x32xf32>
    %349 = math.tanh %348 : vector<2x32xf32>
    %350 = arith.mulf %345, %349 : vector<2x32xf32>
    %c0_75 = arith.constant 0 : index
    %c14 = arith.constant 14 : index
    %c0_76 = arith.constant 0 : index
    %351 = vector.load %arg10[%c0_75, %c14, %c0_76] : memref<2x16x32xf32, #tpu.memory_space<vmem>>, vector<2x1x32xf32>
    %352 = vector.shape_cast %351 : vector<2x1x32xf32> to vector<2x32xf32>
    %353 = vector.shape_cast %350 : vector<2x32xf32> to vector<2x1x32xf32>
    tpu.vector_store %arg10[%c0_75, %c14, %c0_76], %353 {strides = array<i32>} : memref<2x16x32xf32, #tpu.memory_space<vmem>>, vector<2x1x32xf32>,
    %354 = vector.extract_strided_slice %21 {offsets = [0, 15, 0], sizes = [2, 1, 128], strides = [1, 1, 1]} : vector<2x16x128xf32> to vector<2x1x128xf32>
    %355 = vector.shape_cast %354 : vector<2x1x128xf32> to vector<2x128xf32>
    %cst_77 = arith.constant dense<0.000000e+00> : vector<2x128xf32>
    %356 = tpu.matmul %350, %15, %cst_77 {dimension_numbers = #tpu.dot_dimension_numbers<[1], [0], [0], [1], [0, 0, 1, 1], [], []>} : vector<2x32xf32>, vector<32x128xf32>, vector<2x128xf32> -> vector<2x128xf32>
    %357 = arith.addf %355, %356 : vector<2x128xf32>
    %358 = arith.negf %357 : vector<2x128xf32>
    %359 = math.exp %358 : vector<2x128xf32>
    %cst_78 = arith.constant 1.000000e+00 : f32
    %360 = vector.broadcast %cst_78 : f32 to vector<2x128xf32>
    %361 = arith.addf %360, %359 : vector<2x128xf32>
    %362 = arith.divf %360, %361 : vector<2x128xf32>
    %363 = math.tanh %357 : vector<2x128xf32>
    %364 = vector.extract_strided_slice %362 {offsets = [0, 0], sizes = [2, 32], strides = [1, 1]} : vector<2x128xf32> to vector<2x32xf32>
    %365 = vector.extract_strided_slice %362 {offsets = [0, 32], sizes = [2, 32], strides = [1, 1]} : vector<2x128xf32> to vector<2x32xf32>
    %366 = vector.extract_strided_slice %363 {offsets = [0, 64], sizes = [2, 32], strides = [1, 1]} : vector<2x128xf32> to vector<2x32xf32>
    %367 = vector.extract_strided_slice %362 {offsets = [0, 96], sizes = [2, 32], strides = [1, 1]} : vector<2x128xf32> to vector<2x32xf32>
    %368 = arith.mulf %365, %348 : vector<2x32xf32>
    %369 = arith.mulf %364, %366 : vector<2x32xf32>
    %370 = arith.addf %368, %369 : vector<2x32xf32>
    %371 = math.tanh %370 : vector<2x32xf32>
    %372 = arith.mulf %367, %371 : vector<2x32xf32>
    %c0_79 = arith.constant 0 : index
    %c15 = arith.constant 15 : index
    %c0_80 = arith.constant 0 : index
    %373 = vector.load %arg10[%c0_79, %c15, %c0_80] : memref<2x16x32xf32, #tpu.memory_space<vmem>>, vector<2x1x32xf32>
    %374 = vector.shape_cast %373 : vector<2x1x32xf32> to vector<2x32xf32>
    %375 = vector.shape_cast %372 : vector<2x32xf32> to vector<2x1x32xf32>
    tpu.vector_store %arg10[%c0_79, %c15, %c0_80], %375 {strides = array<i32>} : memref<2x16x32xf32, #tpu.memory_space<vmem>>, vector<2x1x32xf32>,
    %c0_81 = arith.constant 0 : index
    %c0_82 = arith.constant 0 : index
    %c0_83 = arith.constant 0 : index
    %376 = vector.load %arg10[%c0_81, %c0_82, %c0_83] : memref<2x16x32xf32, #tpu.memory_space<vmem>>, vector<2x16x32xf32>
    %c0_84 = arith.constant 0 : index
    %c0_85 = arith.constant 0 : index
    %377 = vector.load %arg7[%c0_84, %c0_85] : memref<32x16xf32, #tpu.memory_space<vmem>>, vector<32x16xf32>
    %c0_86 = arith.constant 0 : index
    %c0_87 = arith.constant 0 : index
    %378 = vector.load %arg8[%c0_86, %c0_87] : memref<1x16xf32, #tpu.memory_space<vmem>>, vector<1x16xf32>
    %379 = vector.shape_cast %376 : vector<2x16x32xf32> to vector<32x32xf32>
    %cst_88 = arith.constant dense<0.000000e+00> : vector<32x16xf32>
    %380 = tpu.matmul %379, %377, %cst_88 {dimension_numbers = #tpu.dot_dimension_numbers<[1], [0], [0], [1], [0, 0, 1, 1], [], []>} : vector<32x32xf32>, vector<32x16xf32>, vector<32x16xf32> -> vector<32x16xf32>
    %381 = vector.broadcast %378 : vector<1x16xf32> to vector<32x16xf32>
    %382 = arith.addf %380, %381 : vector<32x16xf32>
    %cst_89 = arith.constant 0.000000e+00 : f32
    %383 = vector.broadcast %cst_89 : f32 to vector<32x16xf32>
    %384 = arith.maximumf %382, %383 : vector<32x16xf32>
    %385 = vector.shape_cast %384 : vector<32x16xf32> to vector<2x16x16xf32>
    %c0_90 = arith.constant 0 : index
    %c0_91 = arith.constant 0 : index
    %c0_92 = arith.constant 0 : index
    %386 = vector.load %arg9[%c0_90, %c0_91, %c0_92] : memref<2x16x16xf32, #tpu.memory_space<vmem>>, vector<2x16x16xf32>
    tpu.vector_store %arg9[%c0_90, %c0_91, %c0_92], %385 {strides = array<i32>} : memref<2x16x16xf32, #tpu.memory_space<vmem>>, vector<2x16x16xf32>,
    return
  }
  func.func @transform_0(%arg0: i32) -> (i32, i32, i32) {
    %c0_i32 = arith.constant 0 : i32
    %c0_i32_0 = arith.constant 0 : i32
    %c0_i32_1 = arith.constant 0 : i32
    return %arg0, %c0_i32, %c0_i32_0 : i32, i32, i32
  }
  func.func @transform_1(%arg0: i32) -> (i32, i32) {
    %c0_i32 = arith.constant 0 : i32
    %c0_i32_0 = arith.constant 0 : i32
    %c0_i32_1 = arith.constant 0 : i32
    return %c0_i32, %c0_i32_0 : i32, i32
  }
  func.func @transform_2(%arg0: i32) -> (i32, i32) {
    %c0_i32 = arith.constant 0 : i32
    %c0_i32_0 = arith.constant 0 : i32
    %c0_i32_1 = arith.constant 0 : i32
    return %c0_i32, %c0_i32_0 : i32, i32
  }
  func.func @transform_3(%arg0: i32) -> (i32, i32) {
    %c0_i32 = arith.constant 0 : i32
    %c0_i32_0 = arith.constant 0 : i32
    %c0_i32_1 = arith.constant 0 : i32
    return %c0_i32, %c0_i32_0 : i32, i32
  }
  func.func @transform_4(%arg0: i32) -> (i32, i32) {
    %c0_i32 = arith.constant 0 : i32
    %c0_i32_0 = arith.constant 0 : i32
    %c0_i32_1 = arith.constant 0 : i32
    return %c0_i32, %c0_i32_0 : i32, i32
  }
  func.func @transform_5(%arg0: i32) -> (i32, i32) {
    %c0_i32 = arith.constant 0 : i32
    %c0_i32_0 = arith.constant 0 : i32
    %c0_i32_1 = arith.constant 0 : i32
    return %c0_i32, %c0_i32_0 : i32, i32
  }
  func.func @transform_6(%arg0: i32) -> (i32, i32) {
    %c0_i32 = arith.constant 0 : i32
    %c0_i32_0 = arith.constant 0 : i32
    %c0_i32_1 = arith.constant 0 : i32
    return %c0_i32, %c0_i32_0 : i32, i32
  }
  func.func @transform_7(%arg0: i32) -> (i32, i32) {
    %c0_i32 = arith.constant 0 : i32
    %c0_i32_0 = arith.constant 0 : i32
    %c0_i32_1 = arith.constant 0 : i32
    return %c0_i32, %c0_i32_0 : i32, i32
  }
  func.func @transform_8(%arg0: i32) -> (i32, i32, i32) {
    %c0_i32 = arith.constant 0 : i32
    %c0_i32_0 = arith.constant 0 : i32
    %c0_i32_1 = arith.constant 0 : i32
    return %arg0, %c0_i32, %c0_i32_0 : i32, i32, i32
  }
}

</mosaic_0001>

<llo_original>
// kernel: _lambda_.1
$region0: #{_lambda_.1}
  #allocation0 [shape = 'u32[]', space=smem, size = 0x4, offset = 0x4, fixed_abs, tag = 'smem constant byte address 0x4 - core index']
  #allocation1 [shape = 'u32[72,128]{1,0:T(1,128)}', space=vmem, size = 0x9000, scoped, tag = 'internal scratch']
  #allocation2 [shape = 'f32[2,16,32]{2,1,0:T(8,128)}', space=vmem, size = 0x4000, scoped, tag = 'scratch operand']
  %s0 = inlined_call_operand.vmem [shape: f32[2,18,4], index: 0, kind: input, shape index: {}]
  %s1 = inlined_call_operand.vmem [shape: f32[12,8], index: 1, kind: input, shape index: {}]
  %s2 = inlined_call_operand.vmem [shape: f32[1,8], index: 2, kind: input, shape index: {}]
  %s3 = inlined_call_operand.vmem [shape: f32[8,128], index: 3, kind: input, shape index: {}]
  %s4 = inlined_call_operand.vmem [shape: f32[32,128], index: 4, kind: input, shape index: {}]
  %s5 = inlined_call_operand.vmem [shape: f32[1,128], index: 5, kind: input, shape index: {}]
  %s6 = inlined_call_operand.vmem [shape: f32[32,16], index: 6, kind: input, shape index: {}]
  %s7 = inlined_call_operand.vmem [shape: f32[1,16], index: 7, kind: input, shape index: {}]
  %s8 = inlined_call_operand.hbm [shape: f32[2,16,16], index: 8, kind: output, shape index: {}]
  %s9 = sld [smem:[#allocation0]]
  $region42: #{_lambda_.1} parent=0
    _
  %s11 = ssub.s32 1, %s9
  %s12 = scalar_select 0, %s11, %s9
  $region1: #{_lambda_.1} parent=0
    #allocation3 [shape = 'u8[16384]{0}', space=vmem, size = 0x4000, scoped, tag = 'output window, operand 0, single buffered']
    #allocation4 [shape = 's32[1]{0}', space=sflag, size = 0x4, scoped, tag = 'scoped memory for _lambda_.1']
    %13 = vsyncpa [#allocation4], 0
    // Predicated region
    $region2: #{_lambda_.1} parent=1 // pred_check
      _
    $region3: #{_lambda_.1} parent=1 // pred_check_branch
      %15 = sbr.rel (0) target = $region5
    $region4: #{_lambda_.1} parent=1 // pred_region
      _
    $region5: #{_lambda_.1} parent=1 // pred_fallthru
      _
    // Predicated region
    $region6: #{_lambda_.1} parent=1 // pred_check
      _
    $region7: #{_lambda_.1} parent=1 // pred_check_branch
      %17 = sbr.rel (0) target = $region9
    $region8: #{_lambda_.1} parent=1 // pred_region
      _
    $region9: #{_lambda_.1} parent=1 // pred_fallthru
      _
    // Predicated region
    $region10: #{_lambda_.1} parent=1 // pred_check
      _
    $region11: #{_lambda_.1} parent=1 // pred_check_branch
      %19 = sbr.rel (0) target = $region13
    $region12: #{_lambda_.1} parent=1 // pred_region
      _
    $region13: #{_lambda_.1} parent=1 // pred_fallthru
      _
    // Predicated region
    $region14: #{_lambda_.1} parent=1 // pred_check
      _
    $region15: #{_lambda_.1} parent=1 // pred_check_branch
      %21 = sbr.rel (0) target = $region17
    $region16: #{_lambda_.1} parent=1 // pred_region
      _
    $region17: #{_lambda_.1} parent=1 // pred_fallthru
      _
    // Predicated region
    $region18: #{_lambda_.1} parent=1 // pred_check
      _
    $region19: #{_lambda_.1} parent=1 // pred_check_branch
      %23 = sbr.rel (0) target = $region21
    $region20: #{_lambda_.1} parent=1 // pred_region
      _
    $region21: #{_lambda_.1} parent=1 // pred_fallthru
      _
    // Predicated region
    $region22: #{_lambda_.1} parent=1 // pred_check
      _
    $region23: #{_lambda_.1} parent=1 // pred_check_branch
      %25 = sbr.rel (0) target = $region25
    $region24: #{_lambda_.1} parent=1 // pred_region
      _
    $region25: #{_lambda_.1} parent=1 // pred_fallthru
      _
    // Predicated region
    $region26: #{_lambda_.1} parent=1 // pred_check
      _
    $region27: #{_lambda_.1} parent=1 // pred_check_branch
      %27 = sbr.rel (0) target = $region29
    $region28: #{_lambda_.1} parent=1 // pred_region
      _
    $region29: #{_lambda_.1} parent=1 // pred_fallthru
      _
    // Predicated region
    $region30: #{_lambda_.1} parent=1 // pred_check
      _
    $region31: #{_lambda_.1} parent=1 // pred_check_branch
      %29 = sbr.rel (0) target = $region33
    $region32: #{_lambda_.1} parent=1 // pred_region
      _
    $region33: #{_lambda_.1} parent=1 // pred_fallthru
      _
    %v30 = vld [vmem:[%s0] sm:$0xff]
    %v31 = vld [vmem:[%s0 + $0x8] sm:$0xff]
    %v32 = vld [vmem:[%s0 + $0x10] sm:$0x3]
    %v33 = vld [vmem:[%s0 + $0x18] sm:$0xff]
    %v34 = vld [vmem:[%s0 + $0x20] sm:$0xff]
    %v35 = vld [vmem:[%s0 + $0x28] sm:$0x3]
    %v36 = vld [vmem:[%s1] sm:$0xff]
    %v37 = vld [vmem:[%s1 + $0x8] sm:$0xf]
    %v38 = vld [vmem:[%s2] sm:$0x1]
    %vm45 = vcmask 1046528
    %v46 = vrot.slane %v30, 1
    %v47 = vrot.slane %v31, 1
    %v48 = vsel %vm45, %v46, %v47
    %v49 = vrot.slane %v32, 1
    %v50 = vsel %vm45, %v47, %v49
    %v51 = vrot.slane %v33, 1
    %v52 = vrot.slane %v34, 1
    %v53 = vsel %vm45, %v51, %v52
    %v54 = vrot.slane %v35, 1
    %v55 = vsel %vm45, %v52, %v54
    %56 = vrot.lane.b32.xlu0 %v48, 4
    %v57 = vpop.permute.xlu0 %56
    %58 = vrot.lane.b32.xlu0 %v50, 4
    %v59 = vpop.permute.xlu0 %58
    %60 = vrot.lane.b32.xlu0 %v53, 4
    %v61 = vpop.permute.xlu0 %60
    %62 = vrot.lane.b32.xlu0 %v55, 4
    %v63 = vpop.permute.xlu0 %62
    %vm68 = vcmask 1045504
    %v69 = vrot.slane %v30, 2
    %v70 = vrot.slane %v31, 2
    %v71 = vsel %vm68, %v69, %v70
    %v72 = vrot.slane %v32, 2
    %v73 = vsel %vm68, %v70, %v72
    %v74 = vrot.slane %v33, 2
    %v75 = vrot.slane %v34, 2
    %v76 = vsel %vm68, %v74, %v75
    %v77 = vrot.slane %v35, 2
    %v78 = vsel %vm68, %v75, %v77
    %79 = vrot.lane.b32.xlu0 %v71, 8
    %v80 = vpop.permute.xlu0 %79
    %81 = vrot.lane.b32.xlu0 %v73, 8
    %v82 = vpop.permute.xlu0 %81
    %83 = vrot.lane.b32.xlu0 %v76, 8
    %v84 = vpop.permute.xlu0 %83
    %85 = vrot.lane.b32.xlu0 %v78, 8
    %v86 = vpop.permute.xlu0 %85
    %vm91 = vcmask 31744
    %v92 = vsel %vm91, %v30, %v57
    %v93 = vsel %vm91, %v31, %v59
    %v94 = vsel %vm91, %v33, %v61
    %v95 = vsel %vm91, %v34, %v63
    %vm96 = vcmask 64512
    %v97 = vsel %vm96, %v92, %v80
    %v98 = vsel %vm96, %v93, %v82
    %v99 = vsel %vm96, %v94, %v84
    %v100 = vsel %vm96, %v95, %v86
    %v102 = vperm.slane %v38, 0
    %vm104 = vcmask 97280
    %v106 = vsel %vm104, %v97, 0
    %v109 = vsel %vm104, %v98, 0
    %v112 = vsel %vm104, %v99, 0
    %v115 = vsel %vm104, %v100, 0
    %vm117 = vcmask 1043456
    %v119 = vsel %vm117, %v37, 0
    %121 = vmatpush.msra.mxu0 0.0
    %122 = vmatpush.msra.mxu0 0.0
    %123 = vmatpush.msra.mxu0 0.0
    %124 = vmatpush.msra.mxu0 0.0
    %125 = vmatpush.msra.mxu0 0.0
    %126 = vmatpush.msra.mxu0 0.0
    %127 = vmatpush.msra.mxu0 0.0
    %128 = vmatpush.msra.mxu0 0.0
    %129 = vmatpush.msra.mxu0 0.0
    %130 = vmatpush.msra.mxu0 0.0
    %131 = vmatpush.msra.mxu0 0.0
    %132 = vmatpush.msra.mxu0 0.0
    %133 = vmatpush.msra.mxu0 0.0
    %134 = vmatpush.msra.mxu0 0.0
    %135 = vmatpush.msra.mxu0 %v119
    %136 = vmatpush.msra.mxu0 %v36
    %137 = vmatmul.f32.gmra.mxu0 %v106
    %v138 = vpop.f32.mrf.mxu0
    %v139 = vadd.f32 %v102, %v138
    %140 = vmatmul.f32.gmra.mxu0 %v109
    %v141 = vpop.f32.mrf.mxu0
    %v142 = vadd.f32 %v102, %v141
    %143 = vmatmul.f32.gmra.mxu0 %v112
    %v144 = vpop.f32.mrf.mxu0
    %v145 = vadd.f32 %v102, %v144
    %146 = vmatmul.f32.gmra.mxu0 %v115
    %v147 = vpop.f32.mrf.mxu0
    %v148 = vadd.f32 %v102, %v147
    %149 = vdwg.mxu0
    %v150 = vmax.f32 %v139, 0.0
    %v151 = vmax.f32 %v142, 0.0
    %v152 = vmax.f32 %v145, 0.0
    %v153 = vmax.f32 %v148, 0.0
    %v154 = vld [vmem:[%s3] sm:$0xff]
    %v155 = vld [vmem:[%s4] sm:$0xff]
    %v156 = vld [vmem:[%s4 + $0x8] sm:$0xff]
    %v157 = vld [vmem:[%s4 + $0x10] sm:$0xff]
    %v158 = vld [vmem:[%s4 + $0x18] sm:$0xff]
    %v159 = vld [vmem:[%s5] sm:$0x1]
    %v161 = vperm.slane %v159, 0
    %v164 = vsel %vm96, %v150, 0
    %v167 = vsel %vm96, %v151, 0
    %v170 = vsel %vm96, %v152, 0
    %v173 = vsel %vm96, %v153, 0
    %175 = vmatpush.msra.mxu0 0.0
    %176 = vmatpush.msra.mxu0 0.0
    %177 = vmatpush.msra.mxu0 0.0
    %178 = vmatpush.msra.mxu0 0.0
    %179 = vmatpush.msra.mxu0 0.0
    %180 = vmatpush.msra.mxu0 0.0
    %181 = vmatpush.msra.mxu0 0.0
    %182 = vmatpush.msra.mxu0 0.0
    %183 = vmatpush.msra.mxu0 0.0
    %184 = vmatpush.msra.mxu0 0.0
    %185 = vmatpush.msra.mxu0 0.0
    %186 = vmatpush.msra.mxu0 0.0
    %187 = vmatpush.msra.mxu0 0.0
    %188 = vmatpush.msra.mxu0 0.0
    %189 = vmatpush.msra.mxu0 0.0
    %190 = vmatpush.msra.mxu0 %v154
    %191 = vmatmul.f32.gmra.mxu0 %v164
    %v192 = vpop.f32.mrf.mxu0
    %v193 = vadd.f32 %v161, %v192
    %194 = vmatmul.f32.gmra.mxu0 %v167
    %v195 = vpop.f32.mrf.mxu0
    %v196 = vadd.f32 %v161, %v195
    %197 = vmatmul.f32.gmra.mxu0 %v170
    %v198 = vpop.f32.mrf.mxu0
    %v199 = vadd.f32 %v161, %v198
    %200 = vmatmul.f32.gmra.mxu0 %v173
    %v201 = vpop.f32.mrf.mxu0
    %v202 = vadd.f32 %v161, %v201
    %203 = vdwg.mxu0
    %vm204 = vcmask 261120
    %v206 = vsel %vm204, 0.0, 0
    %208 = vmatpush.msra.mxu0 0.0
    %209 = vmatpush.msra.mxu0 0.0
    %210 = vmatpush.msra.mxu0 0.0
    %211 = vmatpush.msra.mxu0 0.0
    %212 = vmatpush.msra.mxu0 0.0
    %213 = vmatpush.msra.mxu0 0.0
    %214 = vmatpush.msra.mxu0 0.0
    %215 = vmatpush.msra.mxu0 0.0
    %216 = vmatpush.msra.mxu0 0.0
    %217 = vmatpush.msra.mxu0 0.0
    %218 = vmatpush.msra.mxu0 0.0
    %219 = vmatpush.msra.mxu0 0.0
    %220 = vmatpush.msra.mxu0 %v158
    %221 = vmatpush.msra.mxu0 %v157
    %222 = vmatpush.msra.mxu0 %v156
    %223 = vmatpush.msra.mxu0 %v155
    %224 = vmatmul.f32.gmra.mxu0 %v206
    %v225 = vpop.f32.mrf.mxu0
    %v226 = vadd.f32 0.0, %v225
    %227 = vdwg.mxu0
    %v229 = vrot.slane %v226, 1
    %v232 = vadd.f32 %v193, %v226
    %v233 = vadd.f32 %v199, %v229
    %v234 = vxor.u32 %v232, 2147483648
    %v235 = vxor.u32 %v233, 2147483648
    %v236 = vmul.f32 %v234, 1.442695
    %v237 = vpow.pop %v236
    %v238 = vmul.f32 %v235, 1.442695
    %v239 = vpow.pop %v238
    %v240 = vadd.f32 %v237, 1.0
    %v241 = vadd.f32 %v239, 1.0
    %v242 = vrcp.pop %v240
    %v243 = vmul.f32 %v240, %v242
    %v244 = vsub.f32 1.0, %v243
    %v245 = vmul.f32 %v242, %v244
    %v246 = vadd.f32 %v242, %v245
    %vm247 = vweird.f32 %v240
    %vm248 = vweird.f32 %v242
    %vm249 = vmor %vm247, %vm248
    %v250 = vsel %vm249, %v242, %v246
    %v251 = vand.u32 2147483647, %v240
    %vm252 = vcmp.eq.f32.partialorder %v251, 8.507059e+37
    %v253 = vand.u32 %v240, 2147483648
    %v254 = vor.u32 1.1754944e-38, %v253
    %v255 = vsel %vm252, %v254, %v250
    %v256 = vmul.f32 1.0, %v255
    %v257 = vrcp.pop %v241
    %v258 = vmul.f32 %v241, %v257
    %v259 = vsub.f32 1.0, %v258
    %v260 = vmul.f32 %v257, %v259
    %v261 = vadd.f32 %v257, %v260
    %vm262 = vweird.f32 %v241
    %vm263 = vweird.f32 %v257
    %vm264 = vmor %vm262, %vm263
    %v265 = vsel %vm264, %v257, %v261
    %v266 = vand.u32 2147483647, %v241
    %vm267 = vcmp.eq.f32.partialorder %v266, 8.507059e+37
    %v268 = vand.u32 %v241, 2147483648
    %v269 = vor.u32 1.1754944e-38, %v268
    %v270 = vsel %vm267, %v269, %v265
    %v271 = vmul.f32 1.0, %v270
    %v272 = vtanh.pop %v232
    %v273 = vtanh.pop %v233
    %v274 = vmul.f32 %v256, 0.0
    %v275 = vmul.f32 %v271, 0.0
    %278 = vrot.lane.b32.xlu0 %v272, 64
    %v279 = vpop.permute.xlu0 %278
    %280 = vrot.lane.b32.xlu0 %v273, 64
    %v281 = vpop.permute.xlu0 %280
    %v284 = vmul.f32 %v256, %v279
    %v285 = vmul.f32 %v271, %v281
    %288 = vrot.lane.b32.xlu0 %v284, 32
    %v289 = vpop.permute.xlu0 %288
    %290 = vrot.lane.b32.xlu0 %v285, 32
    %v291 = vpop.permute.xlu0 %290
    %v294 = vadd.f32 %v274, %v289
    %v295 = vadd.f32 %v275, %v291
    %v296 = vtanh.pop %v294
    %v297 = vtanh.pop %v295
    %300 = vrot.lane.b32.xlu0 %v296, 64
    %v301 = vpop.permute.xlu0 %300
    %302 = vrot.lane.b32.xlu0 %v297, 64
    %v303 = vpop.permute.xlu0 %302
    %v306 = vmul.f32 %v256, %v301
    %v307 = vmul.f32 %v271, %v303
    %310 = vrot.lane.b32.xlu0 %v306, 32
    %v311 = vpop.permute.xlu0 %310
    %312 = vrot.lane.b32.xlu0 %v307, 32
    %v313 = vpop.permute.xlu0 %312
    %vm316 = vcmask 253952
    %317 = vst.msk [vmem:[#allocation2] sm:$0x1] %vm316, %v311
    %318 = vst.msk [vmem:[#allocation2 + $0x10] sm:$0x1] %vm316, %v313
    %v319 = vrot.slane %v307, 7
    %vm320 = vcmask 1041409
    %v321 = vsel %vm320, %v319, %v306
    %322 = vrot.lane.b32.xlu0 %v321, 32
    %v323 = vpop.permute.xlu0 %322
    %v324 = vsel %vm204, %v323, 0
    %326 = vmatpush.msra.mxu0 0.0
    %327 = vmatpush.msra.mxu0 0.0
    %328 = vmatpush.msra.mxu0 0.0
    %329 = vmatpush.msra.mxu0 0.0
    %330 = vmatpush.msra.mxu0 0.0
    %331 = vmatpush.msra.mxu0 0.0
    %332 = vmatpush.msra.mxu0 0.0
    %333 = vmatpush.msra.mxu0 0.0
    %334 = vmatpush.msra.mxu0 0.0
    %335 = vmatpush.msra.mxu0 0.0
    %336 = vmatpush.msra.mxu0 0.0
    %337 = vmatpush.msra.mxu0 0.0
    %338 = vmatpush.msra.mxu0 %v158
    %339 = vmatpush.msra.mxu0 %v157
    %340 = vmatpush.msra.mxu0 %v156
    %341 = vmatpush.msra.mxu0 %v155
    %342 = vmatmul.f32.gmra.mxu0 %v324
    %v343 = vpop.f32.mrf.mxu0
    %v344 = vadd.f32 0.0, %v343
    %345 = vdwg.mxu0
    %v347 = vrot.slane %v344, 7
    %v350 = vadd.f32 %v193, %v347
    %v351 = vadd.f32 %v199, %v344
    %v352 = vxor.u32 %v350, 2147483648
    %v353 = vxor.u32 %v351, 2147483648
    %v354 = vmul.f32 %v352, 1.442695
    %v355 = vpow.pop %v354
    %v356 = vmul.f32 %v353, 1.442695
    %v357 = vpow.pop %v356
    %v358 = vadd.f32 %v355, 1.0
    %v359 = vadd.f32 %v357, 1.0
    %v360 = vrcp.pop %v358
    %v361 = vmul.f32 %v358, %v360
    %v362 = vsub.f32 1.0, %v361
    %v363 = vmul.f32 %v360, %v362
    %v364 = vadd.f32 %v360, %v363
    %vm365 = vweird.f32 %v358
    %vm366 = vweird.f32 %v360
    %vm367 = vmor %vm365, %vm366
    %v368 = vsel %vm367, %v360, %v364
    %v369 = vand.u32 2147483647, %v358
    %vm370 = vcmp.eq.f32.partialorder %v369, 8.507059e+37
    %v371 = vand.u32 %v358, 2147483648
    %v372 = vor.u32 1.1754944e-38, %v371
    %v373 = vsel %vm370, %v372, %v368
    %v374 = vmul.f32 1.0, %v373
    %v375 = vrcp.pop %v359
    %v376 = vmul.f32 %v359, %v375
    %v377 = vsub.f32 1.0, %v376
    %v378 = vmul.f32 %v375, %v377
    %v379 = vadd.f32 %v375, %v378
    %vm380 = vweird.f32 %v359
    %vm381 = vweird.f32 %v375
    %vm382 = vmor %vm380, %vm381
    %v383 = vsel %vm382, %v375, %v379
    %v384 = vand.u32 2147483647, %v359
    %vm385 = vcmp.eq.f32.partialorder %v384, 8.507059e+37
    %v386 = vand.u32 %v359, 2147483648
    %v387 = vor.u32 1.1754944e-38, %v386
    %v388 = vsel %vm385, %v387, %v383
    %v389 = vmul.f32 1.0, %v388
    %v390 = vtanh.pop %v350
    %v391 = vtanh.pop %v351
    %v394 = vrot.slane %v294, 7
    %v395 = vrot.slane %v295, 7
    %v398 = vmul.f32 %v374, %v394
    %v399 = vmul.f32 %v389, %v395
    %402 = vrot.lane.b32.xlu0 %v390, 64
    %v403 = vpop.permute.xlu0 %402
    %404 = vrot.lane.b32.xlu0 %v391, 64
    %v405 = vpop.permute.xlu0 %404
    %v408 = vmul.f32 %v374, %v403
    %v409 = vmul.f32 %v389, %v405
    %412 = vrot.lane.b32.xlu0 %v408, 32
    %v413 = vpop.permute.xlu0 %412
    %414 = vrot.lane.b32.xlu0 %v409, 32
    %v415 = vpop.permute.xlu0 %414
    %v418 = vadd.f32 %v398, %v413
    %v419 = vadd.f32 %v399, %v415
    %v420 = vtanh.pop %v418
    %v421 = vtanh.pop %v419
    %424 = vrot.lane.b32.xlu0 %v420, 64
    %v425 = vpop.permute.xlu0 %424
    %426 = vrot.lane.b32.xlu0 %v421, 64
    %v427 = vpop.permute.xlu0 %426
    %v430 = vmul.f32 %v374, %v425
    %v431 = vmul.f32 %v389, %v427
    %434 = vrot.lane.b32.xlu0 %v430, 32
    %v435 = vpop.permute.xlu0 %434
    %436 = vrot.lane.b32.xlu0 %v431, 32
    %v437 = vpop.permute.xlu0 %436
    %vm440 = vcmask 254977
    %441 = vst.msk [vmem:[#allocation2] sm:$0x2] %vm440, %v435
    %442 = vst.msk [vmem:[#allocation2 + $0x10] sm:$0x2] %vm440, %v437
    %v443 = vrot.slane %v430, 1
    %v444 = vsel %vm320, %v431, %v443
    %445 = vrot.lane.b32.xlu0 %v444, 32
    %v446 = vpop.permute.xlu0 %445
    %v447 = vsel %vm204, %v446, 0
    %449 = vmatpush.msra.mxu0 0.0
    %450 = vmatpush.msra.mxu0 0.0
    %451 = vmatpush.msra.mxu0 0.0
    %452 = vmatpush.msra.mxu0 0.0
    %453 = vmatpush.msra.mxu0 0.0
    %454 = vmatpush.msra.mxu0 0.0
    %455 = vmatpush.msra.mxu0 0.0
    %456 = vmatpush.msra.mxu0 0.0
    %457 = vmatpush.msra.mxu0 0.0
    %458 = vmatpush.msra.mxu0 0.0
    %459 = vmatpush.msra.mxu0 0.0
    %460 = vmatpush.msra.mxu0 0.0
    %461 = vmatpush.msra.mxu0 %v158
    %462 = vmatpush.msra.mxu0 %v157
    %463 = vmatpush.msra.mxu0 %v156
    %464 = vmatpush.msra.mxu0 %v155
    %465 = vmatmul.f32.gmra.mxu0 %v447
    %v466 = vpop.f32.mrf.mxu0
    %v467 = vadd.f32 0.0, %v466
    %468 = vdwg.mxu0
    %v470 = vrot.slane %v467, 6
    %v471 = vrot.slane %v467, 7
    %v474 = vadd.f32 %v193, %v470
    %v475 = vadd.f32 %v199, %v471
    %v476 = vxor.u32 %v474, 2147483648
    %v477 = vxor.u32 %v475, 2147483648
    %v478 = vmul.f32 %v476, 1.442695
    %v479 = vpow.pop %v478
    %v480 = vmul.f32 %v477, 1.442695
    %v481 = vpow.pop %v480
    %v482 = vadd.f32 %v479, 1.0
    %v483 = vadd.f32 %v481, 1.0
    %v484 = vrcp.pop %v482
    %v485 = vmul.f32 %v482, %v484
    %v486 = vsub.f32 1.0, %v485
    %v487 = vmul.f32 %v484, %v486
    %v488 = vadd.f32 %v484, %v487
    %vm489 = vweird.f32 %v482
    %vm490 = vweird.f32 %v484
    %vm491 = vmor %vm489, %vm490
    %v492 = vsel %vm491, %v484, %v488
    %v493 = vand.u32 2147483647, %v482
    %vm494 = vcmp.eq.f32.partialorder %v493, 8.507059e+37
    %v495 = vand.u32 %v482, 2147483648
    %v496 = vor.u32 1.1754944e-38, %v495
    %v497 = vsel %vm494, %v496, %v492
    %v498 = vmul.f32 1.0, %v497
    %v499 = vrcp.pop %v483
    %v500 = vmul.f32 %v483, %v499
    %v501 = vsub.f32 1.0, %v500
    %v502 = vmul.f32 %v499, %v501
    %v503 = vadd.f32 %v499, %v502
    %vm504 = vweird.f32 %v483
    %vm505 = vweird.f32 %v499
    %vm506 = vmor %vm504, %vm505
    %v507 = vsel %vm506, %v499, %v503
    %v508 = vand.u32 2147483647, %v483
    %vm509 = vcmp.eq.f32.partialorder %v508, 8.507059e+37
    %v510 = vand.u32 %v483, 2147483648
    %v511 = vor.u32 1.1754944e-38, %v510
    %v512 = vsel %vm509, %v511, %v507
    %v513 = vmul.f32 1.0, %v512
    %v514 = vtanh.pop %v474
    %v515 = vtanh.pop %v475
    %v518 = vrot.slane %v418, 7
    %v519 = vrot.slane %v419, 7
    %v522 = vmul.f32 %v498, %v518
    %v523 = vmul.f32 %v513, %v519
    %526 = vrot.lane.b32.xlu0 %v514, 64
    %v527 = vpop.permute.xlu0 %526
    %528 = vrot.lane.b32.xlu0 %v515, 64
    %v529 = vpop.permute.xlu0 %528
    %v532 = vmul.f32 %v498, %v527
    %v533 = vmul.f32 %v513, %v529
    %536 = vrot.lane.b32.xlu0 %v532, 32
    %v537 = vpop.permute.xlu0 %536
    %538 = vrot.lane.b32.xlu0 %v533, 32
    %v539 = vpop.permute.xlu0 %538
    %v542 = vadd.f32 %v522, %v537
    %v543 = vadd.f32 %v523, %v539
    %v544 = vtanh.pop %v542
    %v545 = vtanh.pop %v543
    %548 = vrot.lane.b32.xlu0 %v544, 64
    %v549 = vpop.permute.xlu0 %548
    %550 = vrot.lane.b32.xlu0 %v545, 64
    %v551 = vpop.permute.xlu0 %550
    %v554 = vmul.f32 %v498, %v549
    %v555 = vmul.f32 %v513, %v551
    %558 = vrot.lane.b32.xlu0 %v554, 32
    %v559 = vpop.permute.xlu0 %558
    %560 = vrot.lane.b32.xlu0 %v555, 32
    %v561 = vpop.permute.xlu0 %560
    %vm564 = vcmask 256002
    %565 = vst.msk [vmem:[#allocation2] sm:$0x4] %vm564, %v559
    %566 = vst.msk [vmem:[#allocation2 + $0x10] sm:$0x4] %vm564, %v561
    %v567 = vrot.slane %v554, 2
    %v568 = vrot.slane %v555, 1
    %v569 = vsel %vm320, %v568, %v567
    %570 = vrot.lane.b32.xlu0 %v569, 32
    %v571 = vpop.permute.xlu0 %570
    %v572 = vsel %vm204, %v571, 0
    %574 = vmatpush.msra.mxu0 0.0
    %575 = vmatpush.msra.mxu0 0.0
    %576 = vmatpush.msra.mxu0 0.0
    %577 = vmatpush.msra.mxu0 0.0
    %578 = vmatpush.msra.mxu0 0.0
    %579 = vmatpush.msra.mxu0 0.0
    %580 = vmatpush.msra.mxu0 0.0
    %581 = vmatpush.msra.mxu0 0.0
    %582 = vmatpush.msra.mxu0 0.0
    %583 = vmatpush.msra.mxu0 0.0
    %584 = vmatpush.msra.mxu0 0.0
    %585 = vmatpush.msra.mxu0 0.0
    %586 = vmatpush.msra.mxu0 %v158
    %587 = vmatpush.msra.mxu0 %v157
    %588 = vmatpush.msra.mxu0 %v156
    %589 = vmatpush.msra.mxu0 %v155
    %590 = vmatmul.f32.gmra.mxu0 %v572
    %v591 = vpop.f32.mrf.mxu0
    %v592 = vadd.f32 0.0, %v591
    %593 = vdwg.mxu0
    %v595 = vrot.slane %v592, 5
    %v596 = vrot.slane %v592, 6
    %v599 = vadd.f32 %v193, %v595
    %v600 = vadd.f32 %v199, %v596
    %v601 = vxor.u32 %v599, 2147483648
    %v602 = vxor.u32 %v600, 2147483648
    %v603 = vmul.f32 %v601, 1.442695
    %v604 = vpow.pop %v603
    %v605 = vmul.f32 %v602, 1.442695
    %v606 = vpow.pop %v605
    %v607 = vadd.f32 %v604, 1.0
    %v608 = vadd.f32 %v606, 1.0
    %v609 = vrcp.pop %v607
    %v610 = vmul.f32 %v607, %v609
    %v611 = vsub.f32 1.0, %v610
    %v612 = vmul.f32 %v609, %v611
    %v613 = vadd.f32 %v609, %v612
    %vm614 = vweird.f32 %v607
    %vm615 = vweird.f32 %v609
    %vm616 = vmor %vm614, %vm615
    %v617 = vsel %vm616, %v609, %v613
    %v618 = vand.u32 2147483647, %v607
    %vm619 = vcmp.eq.f32.partialorder %v618, 8.507059e+37
    %v620 = vand.u32 %v607, 2147483648
    %v621 = vor.u32 1.1754944e-38, %v620
    %v622 = vsel %vm619, %v621, %v617
    %v623 = vmul.f32 1.0, %v622
    %v624 = vrcp.pop %v608
    %v625 = vmul.f32 %v608, %v624
    %v626 = vsub.f32 1.0, %v625
    %v627 = vmul.f32 %v624, %v626
    %v628 = vadd.f32 %v624, %v627
    %vm629 = vweird.f32 %v608
    %vm630 = vweird.f32 %v624
    %vm631 = vmor %vm629, %vm630
    %v632 = vsel %vm631, %v624, %v628
    %v633 = vand.u32 2147483647, %v608
    %vm634 = vcmp.eq.f32.partialorder %v633, 8.507059e+37
    %v635 = vand.u32 %v608, 2147483648
    %v636 = vor.u32 1.1754944e-38, %v635
    %v637 = vsel %vm634, %v636, %v632
    %v638 = vmul.f32 1.0, %v637
    %v639 = vtanh.pop %v599
    %v640 = vtanh.pop %v600
    %v643 = vrot.slane %v542, 7
    %v644 = vrot.slane %v543, 7
    %v647 = vmul.f32 %v623, %v643
    %v648 = vmul.f32 %v638, %v644
    %651 = vrot.lane.b32.xlu0 %v639, 64
    %v652 = vpop.permute.xlu0 %651
    %653 = vrot.lane.b32.xlu0 %v640, 64
    %v654 = vpop.permute.xlu0 %653
    %v657 = vmul.f32 %v623, %v652
    %v658 = vmul.f32 %v638, %v654
    %661 = vrot.lane.b32.xlu0 %v657, 32
    %v662 = vpop.permute.xlu0 %661
    %663 = vrot.lane.b32.xlu0 %v658, 32
    %v664 = vpop.permute.xlu0 %663
    %v667 = vadd.f32 %v647, %v662
    %v668 = vadd.f32 %v648, %v664
    %v669 = vtanh.pop %v667
    %v670 = vtanh.pop %v668
    %673 = vrot.lane.b32.xlu0 %v669, 64
    %v674 = vpop.permute.xlu0 %673
    %675 = vrot.lane.b32.xlu0 %v670, 64
    %v676 = vpop.permute.xlu0 %675
    %v679 = vmul.f32 %v623, %v674
    %v680 = vmul.f32 %v638, %v676
    %683 = vrot.lane.b32.xlu0 %v679, 32
    %v684 = vpop.permute.xlu0 %683
    %685 = vrot.lane.b32.xlu0 %v680, 32
    %v686 = vpop.permute.xlu0 %685
    %vm689 = vcmask 257027
    %690 = vst.msk [vmem:[#allocation2] sm:$0x8] %vm689, %v684
    %691 = vst.msk [vmem:[#allocation2 + $0x10] sm:$0x8] %vm689, %v686
    %v692 = vrot.slane %v679, 3
    %v693 = vrot.slane %v680, 2
    %v694 = vsel %vm320, %v693, %v692
    %695 = vrot.lane.b32.xlu0 %v694, 32
    %v696 = vpop.permute.xlu0 %695
    %v697 = vsel %vm204, %v696, 0
    %699 = vmatpush.msra.mxu0 0.0
    %700 = vmatpush.msra.mxu0 0.0
    %701 = vmatpush.msra.mxu0 0.0
    %702 = vmatpush.msra.mxu0 0.0
    %703 = vmatpush.msra.mxu0 0.0
    %704 = vmatpush.msra.mxu0 0.0
    %705 = vmatpush.msra.mxu0 0.0
    %706 = vmatpush.msra.mxu0 0.0
    %707 = vmatpush.msra.mxu0 0.0
    %708 = vmatpush.msra.mxu0 0.0
    %709 = vmatpush.msra.mxu0 0.0
    %710 = vmatpush.msra.mxu0 0.0
    %711 = vmatpush.msra.mxu0 %v158
    %712 = vmatpush.msra.mxu0 %v157
    %713 = vmatpush.msra.mxu0 %v156
    %714 = vmatpush.msra.mxu0 %v155
    %715 = vmatmul.f32.gmra.mxu0 %v697
    %v716 = vpop.f32.mrf.mxu0
    %v717 = vadd.f32 0.0, %v716
    %718 = vdwg.mxu0
    %v720 = vrot.slane %v717, 4
    %v721 = vrot.slane %v717, 5
    %v724 = vadd.f32 %v193, %v720
    %v725 = vadd.f32 %v199, %v721
    %v726 = vxor.u32 %v724, 2147483648
    %v727 = vxor.u32 %v725, 2147483648
    %v728 = vmul.f32 %v726, 1.442695
    %v729 = vpow.pop %v728
    %v730 = vmul.f32 %v727, 1.442695
    %v731 = vpow.pop %v730
    %v732 = vadd.f32 %v729, 1.0
    %v733 = vadd.f32 %v731, 1.0
    %v734 = vrcp.pop %v732
    %v735 = vmul.f32 %v732, %v734
    %v736 = vsub.f32 1.0, %v735
    %v737 = vmul.f32 %v734, %v736
    %v738 = vadd.f32 %v734, %v737
    %vm739 = vweird.f32 %v732
    %vm740 = vweird.f32 %v734
    %vm741 = vmor %vm739, %vm740
    %v742 = vsel %vm741, %v734, %v738
    %v743 = vand.u32 2147483647, %v732
    %vm744 = vcmp.eq.f32.partialorder %v743, 8.507059e+37
    %v745 = vand.u32 %v732, 2147483648
    %v746 = vor.u32 1.1754944e-38, %v745
    %v747 = vsel %vm744, %v746, %v742
    %v748 = vmul.f32 1.0, %v747
    %v749 = vrcp.pop %v733
    %v750 = vmul.f32 %v733, %v749
    %v751 = vsub.f32 1.0, %v750
    %v752 = vmul.f32 %v749, %v751
    %v753 = vadd.f32 %v749, %v752
    %vm754 = vweird.f32 %v733
    %vm755 = vweird.f32 %v749
    %vm756 = vmor %vm754, %vm755
    %v757 = vsel %vm756, %v749, %v753
    %v758 = vand.u32 2147483647, %v733
    %vm759 = vcmp.eq.f32.partialorder %v758, 8.507059e+37
    %v760 = vand.u32 %v733, 2147483648
    %v761 = vor.u32 1.1754944e-38, %v760
    %v762 = vsel %vm759, %v761, %v757
    %v763 = vmul.f32 1.0, %v762
    %v764 = vtanh.pop %v724
    %v765 = vtanh.pop %v725
    %v768 = vrot.slane %v667, 7
    %v769 = vrot.slane %v668, 7
    %v772 = vmul.f32 %v748, %v768
    %v773 = vmul.f32 %v763, %v769
    %776 = vrot.lane.b32.xlu0 %v764, 64
    %v777 = vpop.permute.xlu0 %776
    %778 = vrot.lane.b32.xlu0 %v765, 64
    %v779 = vpop.permute.xlu0 %778
    %v782 = vmul.f32 %v748, %v777
    %v783 = vmul.f32 %v763, %v779
    %786 = vrot.lane.b32.xlu0 %v782, 32
    %v787 = vpop.permute.xlu0 %786
    %788 = vrot.lane.b32.xlu0 %v783, 32
    %v789 = vpop.permute.xlu0 %788
    %v792 = vadd.f32 %v772, %v787
    %v793 = vadd.f32 %v773, %v789
    %v794 = vtanh.pop %v792
    %v795 = vtanh.pop %v793
    %798 = vrot.lane.b32.xlu0 %v794, 64
    %v799 = vpop.permute.xlu0 %798
    %800 = vrot.lane.b32.xlu0 %v795, 64
    %v801 = vpop.permute.xlu0 %800
    %v804 = vmul.f32 %v748, %v799
    %v805 = vmul.f32 %v763, %v801
    %808 = vrot.lane.b32.xlu0 %v804, 32
    %v809 = vpop.permute.xlu0 %808
    %810 = vrot.lane.b32.xlu0 %v805, 32
    %v811 = vpop.permute.xlu0 %810
    %vm814 = vcmask 258052
    %815 = vst.msk [vmem:[#allocation2] sm:$0x10] %vm814, %v809
    %816 = vst.msk [vmem:[#allocation2 + $0x10] sm:$0x10] %vm814, %v811
    %v817 = vrot.slane %v804, 4
    %v818 = vrot.slane %v805, 3
    %v819 = vsel %vm320, %v818, %v817
    %820 = vrot.lane.b32.xlu0 %v819, 32
    %v821 = vpop.permute.xlu0 %820
    %v822 = vsel %vm204, %v821, 0
    %824 = vmatpush.msra.mxu0 0.0
    %825 = vmatpush.msra.mxu0 0.0
    %826 = vmatpush.msra.mxu0 0.0
    %827 = vmatpush.msra.mxu0 0.0
    %828 = vmatpush.msra.mxu0 0.0
    %829 = vmatpush.msra.mxu0 0.0
    %830 = vmatpush.msra.mxu0 0.0
    %831 = vmatpush.msra.mxu0 0.0
    %832 = vmatpush.msra.mxu0 0.0
    %833 = vmatpush.msra.mxu0 0.0
    %834 = vmatpush.msra.mxu0 0.0
    %835 = vmatpush.msra.mxu0 0.0
    %836 = vmatpush.msra.mxu0 %v158
    %837 = vmatpush.msra.mxu0 %v157
    %838 = vmatpush.msra.mxu0 %v156
    %839 = vmatpush.msra.mxu0 %v155
    %840 = vmatmul.f32.gmra.mxu0 %v822
    %v841 = vpop.f32.mrf.mxu0
    %v842 = vadd.f32 0.0, %v841
    %843 = vdwg.mxu0
    %v845 = vrot.slane %v842, 3
    %v846 = vrot.slane %v842, 4
    %v849 = vadd.f32 %v193, %v845
    %v850 = vadd.f32 %v199, %v846
    %v851 = vxor.u32 %v849, 2147483648
    %v852 = vxor.u32 %v850, 2147483648
    %v853 = vmul.f32 %v851, 1.442695
    %v854 = vpow.pop %v853
    %v855 = vmul.f32 %v852, 1.442695
    %v856 = vpow.pop %v855
    %v857 = vadd.f32 %v854, 1.0
    %v858 = vadd.f32 %v856, 1.0
    %v859 = vrcp.pop %v857
    %v860 = vmul.f32 %v857, %v859
    %v861 = vsub.f32 1.0, %v860
    %v862 = vmul.f32 %v859, %v861
    %v863 = vadd.f32 %v859, %v862
    %vm864 = vweird.f32 %v857
    %vm865 = vweird.f32 %v859
    %vm866 = vmor %vm864, %vm865
    %v867 = vsel %vm866, %v859, %v863
    %v868 = vand.u32 2147483647, %v857
    %vm869 = vcmp.eq.f32.partialorder %v868, 8.507059e+37
    %v870 = vand.u32 %v857, 2147483648
    %v871 = vor.u32 1.1754944e-38, %v870
    %v872 = vsel %vm869, %v871, %v867
    %v873 = vmul.f32 1.0, %v872
    %v874 = vrcp.pop %v858
    %v875 = vmul.f32 %v858, %v874
    %v876 = vsub.f32 1.0, %v875
    %v877 = vmul.f32 %v874, %v876
    %v878 = vadd.f32 %v874, %v877
    %vm879 = vweird.f32 %v858
    %vm880 = vweird.f32 %v874
    %vm881 = vmor %vm879, %vm880
    %v882 = vsel %vm881, %v874, %v878
    %v883 = vand.u32 2147483647, %v858
    %vm884 = vcmp.eq.f32.partialorder %v883, 8.507059e+37
    %v885 = vand.u32 %v858, 2147483648
    %v886 = vor.u32 1.1754944e-38, %v885
    %v887 = vsel %vm884, %v886, %v882
    %v888 = vmul.f32 1.0, %v887
    %v889 = vtanh.pop %v849
    %v890 = vtanh.pop %v850
    %v893 = vrot.slane %v792, 7
    %v894 = vrot.slane %v793, 7
    %v897 = vmul.f32 %v873, %v893
    %v898 = vmul.f32 %v888, %v894
    %901 = vrot.lane.b32.xlu0 %v889, 64
    %v902 = vpop.permute.xlu0 %901
    %903 = vrot.lane.b32.xlu0 %v890, 64
    %v904 = vpop.permute.xlu0 %903
    %v907 = vmul.f32 %v873, %v902
    %v908 = vmul.f32 %v888, %v904
    %911 = vrot.lane.b32.xlu0 %v907, 32
    %v912 = vpop.permute.xlu0 %911
    %913 = vrot.lane.b32.xlu0 %v908, 32
    %v914 = vpop.permute.xlu0 %913
    %v917 = vadd.f32 %v897, %v912
    %v918 = vadd.f32 %v898, %v914
    %v919 = vtanh.pop %v917
    %v920 = vtanh.pop %v918
    %923 = vrot.lane.b32.xlu0 %v919, 64
    %v924 = vpop.permute.xlu0 %923
    %925 = vrot.lane.b32.xlu0 %v920, 64
    %v926 = vpop.permute.xlu0 %925
    %v929 = vmul.f32 %v873, %v924
    %v930 = vmul.f32 %v888, %v926
    %933 = vrot.lane.b32.xlu0 %v929, 32
    %v934 = vpop.permute.xlu0 %933
    %935 = vrot.lane.b32.xlu0 %v930, 32
    %v936 = vpop.permute.xlu0 %935
    %vm939 = vcmask 259077
    %940 = vst.msk [vmem:[#allocation2] sm:$0x20] %vm939, %v934
    %941 = vst.msk [vmem:[#allocation2 + $0x10] sm:$0x20] %vm939, %v936
    %v942 = vrot.slane %v929, 5
    %v943 = vrot.slane %v930, 4
    %v944 = vsel %vm320, %v943, %v942
    %945 = vrot.lane.b32.xlu0 %v944, 32
    %v946 = vpop.permute.xlu0 %945
    %v947 = vsel %vm204, %v946, 0
    %949 = vmatpush.msra.mxu0 0.0
    %950 = vmatpush.msra.mxu0 0.0
    %951 = vmatpush.msra.mxu0 0.0
    %952 = vmatpush.msra.mxu0 0.0
    %953 = vmatpush.msra.mxu0 0.0
    %954 = vmatpush.msra.mxu0 0.0
    %955 = vmatpush.msra.mxu0 0.0
    %956 = vmatpush.msra.mxu0 0.0
    %957 = vmatpush.msra.mxu0 0.0
    %958 = vmatpush.msra.mxu0 0.0
    %959 = vmatpush.msra.mxu0 0.0
    %960 = vmatpush.msra.mxu0 0.0
    %961 = vmatpush.msra.mxu0 %v158
    %962 = vmatpush.msra.mxu0 %v157
    %963 = vmatpush.msra.mxu0 %v156
    %964 = vmatpush.msra.mxu0 %v155
    %965 = vmatmul.f32.gmra.mxu0 %v947
    %v966 = vpop.f32.mrf.mxu0
    %v967 = vadd.f32 0.0, %v966
    %968 = vdwg.mxu0
    %v970 = vrot.slane %v967, 2
    %v971 = vrot.slane %v967, 3
    %v974 = vadd.f32 %v193, %v970
    %v975 = vadd.f32 %v199, %v971
    %v976 = vxor.u32 %v974, 2147483648
    %v977 = vxor.u32 %v975, 2147483648
    %v978 = vmul.f32 %v976, 1.442695
    %v979 = vpow.pop %v978
    %v980 = vmul.f32 %v977, 1.442695
    %v981 = vpow.pop %v980
    %v982 = vadd.f32 %v979, 1.0
    %v983 = vadd.f32 %v981, 1.0
    %v984 = vrcp.pop %v982
    %v985 = vmul.f32 %v982, %v984
    %v986 = vsub.f32 1.0, %v985
    %v987 = vmul.f32 %v984, %v986
    %v988 = vadd.f32 %v984, %v987
    %vm989 = vweird.f32 %v982
    %vm990 = vweird.f32 %v984
    %vm991 = vmor %vm989, %vm990
    %v992 = vsel %vm991, %v984, %v988
    %v993 = vand.u32 2147483647, %v982
    %vm994 = vcmp.eq.f32.partialorder %v993, 8.507059e+37
    %v995 = vand.u32 %v982, 2147483648
    %v996 = vor.u32 1.1754944e-38, %v995
    %v997 = vsel %vm994, %v996, %v992
    %v998 = vmul.f32 1.0, %v997
    %v999 = vrcp.pop %v983
    %v1000 = vmul.f32 %v983, %v999
    %v1001 = vsub.f32 1.0, %v1000
    %v1002 = vmul.f32 %v999, %v1001
    %v1003 = vadd.f32 %v999, %v1002
    %vm1004 = vweird.f32 %v983
    %vm1005 = vweird.f32 %v999
    %vm1006 = vmor %vm1004, %vm1005
    %v1007 = vsel %vm1006, %v999, %v1003
    %v1008 = vand.u32 2147483647, %v983
    %vm1009 = vcmp.eq.f32.partialorder %v1008, 8.507059e+37
    %v1010 = vand.u32 %v983, 2147483648
    %v1011 = vor.u32 1.1754944e-38, %v1010
    %v1012 = vsel %vm1009, %v1011, %v1007
    %v1013 = vmul.f32 1.0, %v1012
    %v1014 = vtanh.pop %v974
    %v1015 = vtanh.pop %v975
    %v1018 = vrot.slane %v917, 7
    %v1019 = vrot.slane %v918, 7
    %v1022 = vmul.f32 %v998, %v1018
    %v1023 = vmul.f32 %v1013, %v1019
    %1026 = vrot.lane.b32.xlu0 %v1014, 64
    %v1027 = vpop.permute.xlu0 %1026
    %1028 = vrot.lane.b32.xlu0 %v1015, 64
    %v1029 = vpop.permute.xlu0 %1028
    %v1032 = vmul.f32 %v998, %v1027
    %v1033 = vmul.f32 %v1013, %v1029
    %1036 = vrot.lane.b32.xlu0 %v1032, 32
    %v1037 = vpop.permute.xlu0 %1036
    %1038 = vrot.lane.b32.xlu0 %v1033, 32
    %v1039 = vpop.permute.xlu0 %1038
    %v1042 = vadd.f32 %v1022, %v1037
    %v1043 = vadd.f32 %v1023, %v1039
    %v1044 = vtanh.pop %v1042
    %v1045 = vtanh.pop %v1043
    %1048 = vrot.lane.b32.xlu0 %v1044, 64
    %v1049 = vpop.permute.xlu0 %1048
    %1050 = vrot.lane.b32.xlu0 %v1045, 64
    %v1051 = vpop.permute.xlu0 %1050
    %v1054 = vmul.f32 %v998, %v1049
    %v1055 = vmul.f32 %v1013, %v1051
    %1058 = vrot.lane.b32.xlu0 %v1054, 32
    %v1059 = vpop.permute.xlu0 %1058
    %1060 = vrot.lane.b32.xlu0 %v1055, 32
    %v1061 = vpop.permute.xlu0 %1060
    %vm1064 = vcmask 260102
    %1065 = vst.msk [vmem:[#allocation2] sm:$0x40] %vm1064, %v1059
    %1066 = vst.msk [vmem:[#allocation2 + $0x10] sm:$0x40] %vm1064, %v1061
    %v1067 = vrot.slane %v1054, 6
    %v1068 = vrot.slane %v1055, 5
    %v1069 = vsel %vm320, %v1068, %v1067
    %1070 = vrot.lane.b32.xlu0 %v1069, 32
    %v1071 = vpop.permute.xlu0 %1070
    %v1072 = vsel %vm204, %v1071, 0
    %1074 = vmatpush.msra.mxu0 0.0
    %1075 = vmatpush.msra.mxu0 0.0
    %1076 = vmatpush.msra.mxu0 0.0
    %1077 = vmatpush.msra.mxu0 0.0
    %1078 = vmatpush.msra.mxu0 0.0
    %1079 = vmatpush.msra.mxu0 0.0
    %1080 = vmatpush.msra.mxu0 0.0
    %1081 = vmatpush.msra.mxu0 0.0
    %1082 = vmatpush.msra.mxu0 0.0
    %1083 = vmatpush.msra.mxu0 0.0
    %1084 = vmatpush.msra.mxu0 0.0
    %1085 = vmatpush.msra.mxu0 0.0
    %1086 = vmatpush.msra.mxu0 %v158
    %1087 = vmatpush.msra.mxu0 %v157
    %1088 = vmatpush.msra.mxu0 %v156
    %1089 = vmatpush.msra.mxu0 %v155
    %1090 = vmatmul.f32.gmra.mxu0 %v1072
    %v1091 = vpop.f32.mrf.mxu0
    %v1092 = vadd.f32 0.0, %v1091
    %1093 = vdwg.mxu0
    %v1095 = vrot.slane %v1092, 1
    %v1096 = vrot.slane %v1092, 2
    %v1099 = vadd.f32 %v193, %v1095
    %v1100 = vadd.f32 %v199, %v1096
    %v1101 = vxor.u32 %v1099, 2147483648
    %v1102 = vxor.u32 %v1100, 2147483648
    %v1103 = vmul.f32 %v1101, 1.442695
    %v1104 = vpow.pop %v1103
    %v1105 = vmul.f32 %v1102, 1.442695
    %v1106 = vpow.pop %v1105
    %v1107 = vadd.f32 %v1104, 1.0
    %v1108 = vadd.f32 %v1106, 1.0
    %v1109 = vrcp.pop %v1107
    %v1110 = vmul.f32 %v1107, %v1109
    %v1111 = vsub.f32 1.0, %v1110
    %v1112 = vmul.f32 %v1109, %v1111
    %v1113 = vadd.f32 %v1109, %v1112
    %vm1114 = vweird.f32 %v1107
    %vm1115 = vweird.f32 %v1109
    %vm1116 = vmor %vm1114, %vm1115
    %v1117 = vsel %vm1116, %v1109, %v1113
    %v1118 = vand.u32 2147483647, %v1107
    %vm1119 = vcmp.eq.f32.partialorder %v1118, 8.507059e+37
    %v1120 = vand.u32 %v1107, 2147483648
    %v1121 = vor.u32 1.1754944e-38, %v1120
    %v1122 = vsel %vm1119, %v1121, %v1117
    %v1123 = vmul.f32 1.0, %v1122
    %v1124 = vrcp.pop %v1108
    %v1125 = vmul.f32 %v1108, %v1124
    %v1126 = vsub.f32 1.0, %v1125
    %v1127 = vmul.f32 %v1124, %v1126
    %v1128 = vadd.f32 %v1124, %v1127
    %vm1129 = vweird.f32 %v1108
    %vm1130 = vweird.f32 %v1124
    %vm1131 = vmor %vm1129, %vm1130
    %v1132 = vsel %vm1131, %v1124, %v1128
    %v1133 = vand.u32 2147483647, %v1108
    %vm1134 = vcmp.eq.f32.partialorder %v1133, 8.507059e+37
    %v1135 = vand.u32 %v1108, 2147483648
    %v1136 = vor.u32 1.1754944e-38, %v1135
    %v1137 = vsel %vm1134, %v1136, %v1132
    %v1138 = vmul.f32 1.0, %v1137
    %v1139 = vtanh.pop %v1099
    %v1140 = vtanh.pop %v1100
    %v1143 = vrot.slane %v1042, 7
    %v1144 = vrot.slane %v1043, 7
    %v1147 = vmul.f32 %v1123, %v1143
    %v1148 = vmul.f32 %v1138, %v1144
    %1151 = vrot.lane.b32.xlu0 %v1139, 64
    %v1152 = vpop.permute.xlu0 %1151
    %1153 = vrot.lane.b32.xlu0 %v1140, 64
    %v1154 = vpop.permute.xlu0 %1153
    %v1157 = vmul.f32 %v1123, %v1152
    %v1158 = vmul.f32 %v1138, %v1154
    %1161 = vrot.lane.b32.xlu0 %v1157, 32
    %v1162 = vpop.permute.xlu0 %1161
    %1163 = vrot.lane.b32.xlu0 %v1158, 32
    %v1164 = vpop.permute.xlu0 %1163
    %v1167 = vadd.f32 %v1147, %v1162
    %v1168 = vadd.f32 %v1148, %v1164
    %v1169 = vtanh.pop %v1167
    %v1170 = vtanh.pop %v1168
    %1173 = vrot.lane.b32.xlu0 %v1169, 64
    %v1174 = vpop.permute.xlu0 %1173
    %1175 = vrot.lane.b32.xlu0 %v1170, 64
    %v1176 = vpop.permute.xlu0 %1175
    %v1179 = vmul.f32 %v1123, %v1174
    %v1180 = vmul.f32 %v1138, %v1176
    %1183 = vrot.lane.b32.xlu0 %v1179, 32
    %v1184 = vpop.permute.xlu0 %1183
    %1185 = vrot.lane.b32.xlu0 %v1180, 32
    %v1186 = vpop.permute.xlu0 %1185
    %vm1189 = vcmask 261127
    %1190 = vst.msk [vmem:[#allocation2] sm:$0x80] %vm1189, %v1184
    %1191 = vst.msk [vmem:[#allocation2 + $0x10] sm:$0x80] %vm1189, %v1186
    %v1192 = vrot.slane %v1179, 7
    %v1193 = vrot.slane %v1180, 6
    %v1194 = vsel %vm320, %v1193, %v1192
    %1195 = vrot.lane.b32.xlu0 %v1194, 32
    %v1196 = vpop.permute.xlu0 %1195
    %v1197 = vsel %vm204, %v1196, 0
    %1199 = vmatpush.msra.mxu0 0.0
    %1200 = vmatpush.msra.mxu0 0.0
    %1201 = vmatpush.msra.mxu0 0.0
    %1202 = vmatpush.msra.mxu0 0.0
    %1203 = vmatpush.msra.mxu0 0.0
    %1204 = vmatpush.msra.mxu0 0.0
    %1205 = vmatpush.msra.mxu0 0.0
    %1206 = vmatpush.msra.mxu0 0.0
    %1207 = vmatpush.msra.mxu0 0.0
    %1208 = vmatpush.msra.mxu0 0.0
    %1209 = vmatpush.msra.mxu0 0.0
    %1210 = vmatpush.msra.mxu0 0.0
    %1211 = vmatpush.msra.mxu0 %v158
    %1212 = vmatpush.msra.mxu0 %v157
    %1213 = vmatpush.msra.mxu0 %v156
    %1214 = vmatpush.msra.mxu0 %v155
    %1215 = vmatmul.f32.gmra.mxu0 %v1197
    %v1216 = vpop.f32.mrf.mxu0
    %v1217 = vadd.f32 0.0, %v1216
    %1218 = vdwg.mxu0
    %v1220 = vrot.slane %v1217, 1
    %v1223 = vadd.f32 %v196, %v1217
    %v1224 = vadd.f32 %v202, %v1220
    %v1225 = vxor.u32 %v1223, 2147483648
    %v1226 = vxor.u32 %v1224, 2147483648
    %v1227 = vmul.f32 %v1225, 1.442695
    %v1228 = vpow.pop %v1227
    %v1229 = vmul.f32 %v1226, 1.442695
    %v1230 = vpow.pop %v1229
    %v1231 = vadd.f32 %v1228, 1.0
    %v1232 = vadd.f32 %v1230, 1.0
    %v1233 = vrcp.pop %v1231
    %v1234 = vmul.f32 %v1231, %v1233
    %v1235 = vsub.f32 1.0, %v1234
    %v1236 = vmul.f32 %v1233, %v1235
    %v1237 = vadd.f32 %v1233, %v1236
    %vm1238 = vweird.f32 %v1231
    %vm1239 = vweird.f32 %v1233
    %vm1240 = vmor %vm1238, %vm1239
    %v1241 = vsel %vm1240, %v1233, %v1237
    %v1242 = vand.u32 2147483647, %v1231
    %vm1243 = vcmp.eq.f32.partialorder %v1242, 8.507059e+37
    %v1244 = vand.u32 %v1231, 2147483648
    %v1245 = vor.u32 1.1754944e-38, %v1244
    %v1246 = vsel %vm1243, %v1245, %v1241
    %v1247 = vmul.f32 1.0, %v1246
    %v1248 = vrcp.pop %v1232
    %v1249 = vmul.f32 %v1232, %v1248
    %v1250 = vsub.f32 1.0, %v1249
    %v1251 = vmul.f32 %v1248, %v1250
    %v1252 = vadd.f32 %v1248, %v1251
    %vm1253 = vweird.f32 %v1232
    %vm1254 = vweird.f32 %v1248
    %vm1255 = vmor %vm1253, %vm1254
    %v1256 = vsel %vm1255, %v1248, %v1252
    %v1257 = vand.u32 2147483647, %v1232
    %vm1258 = vcmp.eq.f32.partialorder %v1257, 8.507059e+37
    %v1259 = vand.u32 %v1232, 2147483648
    %v1260 = vor.u32 1.1754944e-38, %v1259
    %v1261 = vsel %vm1258, %v1260, %v1256
    %v1262 = vmul.f32 1.0, %v1261
    %v1263 = vtanh.pop %v1223
    %v1264 = vtanh.pop %v1224
    %v1267 = vrot.slane %v1167, 7
    %v1268 = vrot.slane %v1168, 7
    %v1271 = vmul.f32 %v1247, %v1267
    %v1272 = vmul.f32 %v1262, %v1268
    %1275 = vrot.lane.b32.xlu0 %v1263, 64
    %v1276 = vpop.permute.xlu0 %1275
    %1277 = vrot.lane.b32.xlu0 %v1264, 64
    %v1278 = vpop.permute.xlu0 %1277
    %v1281 = vmul.f32 %v1247, %v1276
    %v1282 = vmul.f32 %v1262, %v1278
    %1285 = vrot.lane.b32.xlu0 %v1281, 32
    %v1286 = vpop.permute.xlu0 %1285
    %1287 = vrot.lane.b32.xlu0 %v1282, 32
    %v1288 = vpop.permute.xlu0 %1287
    %v1291 = vadd.f32 %v1271, %v1286
    %v1292 = vadd.f32 %v1272, %v1288
    %v1293 = vtanh.pop %v1291
    %v1294 = vtanh.pop %v1292
    %1297 = vrot.lane.b32.xlu0 %v1293, 64
    %v1298 = vpop.permute.xlu0 %1297
    %1299 = vrot.lane.b32.xlu0 %v1294, 64
    %v1300 = vpop.permute.xlu0 %1299
    %v1303 = vmul.f32 %v1247, %v1298
    %v1304 = vmul.f32 %v1262, %v1300
    %1307 = vrot.lane.b32.xlu0 %v1303, 32
    %v1308 = vpop.permute.xlu0 %1307
    %1309 = vrot.lane.b32.xlu0 %v1304, 32
    %v1310 = vpop.permute.xlu0 %1309
    %1313 = vst.msk [vmem:[#allocation2 + $0x8] sm:$0x1] %vm316, %v1308
    %1314 = vst.msk [vmem:[#allocation2 + $0x18] sm:$0x1] %vm316, %v1310
    %v1315 = vrot.slane %v1304, 7
    %v1316 = vsel %vm320, %v1315, %v1303
    %1317 = vrot.lane.b32.xlu0 %v1316, 32
    %v1318 = vpop.permute.xlu0 %1317
    %v1319 = vsel %vm204, %v1318, 0
    %1321 = vmatpush.msra.mxu0 0.0
    %1322 = vmatpush.msra.mxu0 0.0
    %1323 = vmatpush.msra.mxu0 0.0
    %1324 = vmatpush.msra.mxu0 0.0
    %1325 = vmatpush.msra.mxu0 0.0
    %1326 = vmatpush.msra.mxu0 0.0
    %1327 = vmatpush.msra.mxu0 0.0
    %1328 = vmatpush.msra.mxu0 0.0
    %1329 = vmatpush.msra.mxu0 0.0
    %1330 = vmatpush.msra.mxu0 0.0
    %1331 = vmatpush.msra.mxu0 0.0
    %1332 = vmatpush.msra.mxu0 0.0
    %1333 = vmatpush.msra.mxu0 %v158
    %1334 = vmatpush.msra.mxu0 %v157
    %1335 = vmatpush.msra.mxu0 %v156
    %1336 = vmatpush.msra.mxu0 %v155
    %1337 = vmatmul.f32.gmra.mxu0 %v1319
    %v1338 = vpop.f32.mrf.mxu0
    %v1339 = vadd.f32 0.0, %v1338
    %1340 = vdwg.mxu0
    %v1342 = vrot.slane %v1339, 7
    %v1345 = vadd.f32 %v196, %v1342
    %v1346 = vadd.f32 %v202, %v1339
    %v1347 = vxor.u32 %v1345, 2147483648
    %v1348 = vxor.u32 %v1346, 2147483648
    %v1349 = vmul.f32 %v1347, 1.442695
    %v1350 = vpow.pop %v1349
    %v1351 = vmul.f32 %v1348, 1.442695
    %v1352 = vpow.pop %v1351
    %v1353 = vadd.f32 %v1350, 1.0
    %v1354 = vadd.f32 %v1352, 1.0
    %v1355 = vrcp.pop %v1353
    %v1356 = vmul.f32 %v1353, %v1355
    %v1357 = vsub.f32 1.0, %v1356
    %v1358 = vmul.f32 %v1355, %v1357
    %v1359 = vadd.f32 %v1355, %v1358
    %vm1360 = vweird.f32 %v1353
    %vm1361 = vweird.f32 %v1355
    %vm1362 = vmor %vm1360, %vm1361
    %v1363 = vsel %vm1362, %v1355, %v1359
    %v1364 = vand.u32 2147483647, %v1353
    %vm1365 = vcmp.eq.f32.partialorder %v1364, 8.507059e+37
    %v1366 = vand.u32 %v1353, 2147483648
    %v1367 = vor.u32 1.1754944e-38, %v1366
    %v1368 = vsel %vm1365, %v1367, %v1363
    %v1369 = vmul.f32 1.0, %v1368
    %v1370 = vrcp.pop %v1354
    %v1371 = vmul.f32 %v1354, %v1370
    %v1372 = vsub.f32 1.0, %v1371
    %v1373 = vmul.f32 %v1370, %v1372
    %v1374 = vadd.f32 %v1370, %v1373
    %vm1375 = vweird.f32 %v1354
    %vm1376 = vweird.f32 %v1370
    %vm1377 = vmor %vm1375, %vm1376
    %v1378 = vsel %vm1377, %v1370, %v1374
    %v1379 = vand.u32 2147483647, %v1354
    %vm1380 = vcmp.eq.f32.partialorder %v1379, 8.507059e+37
    %v1381 = vand.u32 %v1354, 2147483648
    %v1382 = vor.u32 1.1754944e-38, %v1381
    %v1383 = vsel %vm1380, %v1382, %v1378
    %v1384 = vmul.f32 1.0, %v1383
    %v1385 = vtanh.pop %v1345
    %v1386 = vtanh.pop %v1346
    %v1389 = vrot.slane %v1291, 7
    %v1390 = vrot.slane %v1292, 7
    %v1393 = vmul.f32 %v1369, %v1389
    %v1394 = vmul.f32 %v1384, %v1390
    %1397 = vrot.lane.b32.xlu0 %v1385, 64
    %v1398 = vpop.permute.xlu0 %1397
    %1399 = vrot.lane.b32.xlu0 %v1386, 64
    %v1400 = vpop.permute.xlu0 %1399
    %v1403 = vmul.f32 %v1369, %v1398
    %v1404 = vmul.f32 %v1384, %v1400
    %1407 = vrot.lane.b32.xlu0 %v1403, 32
    %v1408 = vpop.permute.xlu0 %1407
    %1409 = vrot.lane.b32.xlu0 %v1404, 32
    %v1410 = vpop.permute.xlu0 %1409
    %v1413 = vadd.f32 %v1393, %v1408
    %v1414 = vadd.f32 %v1394, %v1410
    %v1415 = vtanh.pop %v1413
    %v1416 = vtanh.pop %v1414
    %1419 = vrot.lane.b32.xlu0 %v1415, 64
    %v1420 = vpop.permute.xlu0 %1419
    %1421 = vrot.lane.b32.xlu0 %v1416, 64
    %v1422 = vpop.permute.xlu0 %1421
    %v1425 = vmul.f32 %v1369, %v1420
    %v1426 = vmul.f32 %v1384, %v1422
    %1429 = vrot.lane.b32.xlu0 %v1425, 32
    %v1430 = vpop.permute.xlu0 %1429
    %1431 = vrot.lane.b32.xlu0 %v1426, 32
    %v1432 = vpop.permute.xlu0 %1431
    %1435 = vst.msk [vmem:[#allocation2 + $0x8] sm:$0x2] %vm440, %v1430
    %1436 = vst.msk [vmem:[#allocation2 + $0x18] sm:$0x2] %vm440, %v1432
    %v1437 = vrot.slane %v1425, 1
    %v1438 = vsel %vm320, %v1426, %v1437
    %1439 = vrot.lane.b32.xlu0 %v1438, 32
    %v1440 = vpop.permute.xlu0 %1439
    %v1441 = vsel %vm204, %v1440, 0
    %1443 = vmatpush.msra.mxu0 0.0
    %1444 = vmatpush.msra.mxu0 0.0
    %1445 = vmatpush.msra.mxu0 0.0
    %1446 = vmatpush.msra.mxu0 0.0
    %1447 = vmatpush.msra.mxu0 0.0
    %1448 = vmatpush.msra.mxu0 0.0
    %1449 = vmatpush.msra.mxu0 0.0
    %1450 = vmatpush.msra.mxu0 0.0
    %1451 = vmatpush.msra.mxu0 0.0
    %1452 = vmatpush.msra.mxu0 0.0
    %1453 = vmatpush.msra.mxu0 0.0
    %1454 = vmatpush.msra.mxu0 0.0
    %1455 = vmatpush.msra.mxu0 %v158
    %1456 = vmatpush.msra.mxu0 %v157
    %1457 = vmatpush.msra.mxu0 %v156
    %1458 = vmatpush.msra.mxu0 %v155
    %1459 = vmatmul.f32.gmra.mxu0 %v1441
    %v1460 = vpop.f32.mrf.mxu0
    %v1461 = vadd.f32 0.0, %v1460
    %1462 = vdwg.mxu0
    %v1464 = vrot.slane %v1461, 6
    %v1465 = vrot.slane %v1461, 7
    %v1468 = vadd.f32 %v196, %v1464
    %v1469 = vadd.f32 %v202, %v1465
    %v1470 = vxor.u32 %v1468, 2147483648
    %v1471 = vxor.u32 %v1469, 2147483648
    %v1472 = vmul.f32 %v1470, 1.442695
    %v1473 = vpow.pop %v1472
    %v1474 = vmul.f32 %v1471, 1.442695
    %v1475 = vpow.pop %v1474
    %v1476 = vadd.f32 %v1473, 1.0
    %v1477 = vadd.f32 %v1475, 1.0
    %v1478 = vrcp.pop %v1476
    %v1479 = vmul.f32 %v1476, %v1478
    %v1480 = vsub.f32 1.0, %v1479
    %v1481 = vmul.f32 %v1478, %v1480
    %v1482 = vadd.f32 %v1478, %v1481
    %vm1483 = vweird.f32 %v1476
    %vm1484 = vweird.f32 %v1478
    %vm1485 = vmor %vm1483, %vm1484
    %v1486 = vsel %vm1485, %v1478, %v1482
    %v1487 = vand.u32 2147483647, %v1476
    %vm1488 = vcmp.eq.f32.partialorder %v1487, 8.507059e+37
    %v1489 = vand.u32 %v1476, 2147483648
    %v1490 = vor.u32 1.1754944e-38, %v1489
    %v1491 = vsel %vm1488, %v1490, %v1486
    %v1492 = vmul.f32 1.0, %v1491
    %v1493 = vrcp.pop %v1477
    %v1494 = vmul.f32 %v1477, %v1493
    %v1495 = vsub.f32 1.0, %v1494
    %v1496 = vmul.f32 %v1493, %v1495
    %v1497 = vadd.f32 %v1493, %v1496
    %vm1498 = vweird.f32 %v1477
    %vm1499 = vweird.f32 %v1493
    %vm1500 = vmor %vm1498, %vm1499
    %v1501 = vsel %vm1500, %v1493, %v1497
    %v1502 = vand.u32 2147483647, %v1477
    %vm1503 = vcmp.eq.f32.partialorder %v1502, 8.507059e+37
    %v1504 = vand.u32 %v1477, 2147483648
    %v1505 = vor.u32 1.1754944e-38, %v1504
    %v1506 = vsel %vm1503, %v1505, %v1501
    %v1507 = vmul.f32 1.0, %v1506
    %v1508 = vtanh.pop %v1468
    %v1509 = vtanh.pop %v1469
    %v1512 = vrot.slane %v1413, 7
    %v1513 = vrot.slane %v1414, 7
    %v1516 = vmul.f32 %v1492, %v1512
    %v1517 = vmul.f32 %v1507, %v1513
    %1520 = vrot.lane.b32.xlu0 %v1508, 64
    %v1521 = vpop.permute.xlu0 %1520
    %1522 = vrot.lane.b32.xlu0 %v1509, 64
    %v1523 = vpop.permute.xlu0 %1522
    %v1526 = vmul.f32 %v1492, %v1521
    %v1527 = vmul.f32 %v1507, %v1523
    %1530 = vrot.lane.b32.xlu0 %v1526, 32
    %v1531 = vpop.permute.xlu0 %1530
    %1532 = vrot.lane.b32.xlu0 %v1527, 32
    %v1533 = vpop.permute.xlu0 %1532
    %v1536 = vadd.f32 %v1516, %v1531
    %v1537 = vadd.f32 %v1517, %v1533
    %v1538 = vtanh.pop %v1536
    %v1539 = vtanh.pop %v1537
    %1542 = vrot.lane.b32.xlu0 %v1538, 64
    %v1543 = vpop.permute.xlu0 %1542
    %1544 = vrot.lane.b32.xlu0 %v1539, 64
    %v1545 = vpop.permute.xlu0 %1544
    %v1548 = vmul.f32 %v1492, %v1543
    %v1549 = vmul.f32 %v1507, %v1545
    %1552 = vrot.lane.b32.xlu0 %v1548, 32
    %v1553 = vpop.permute.xlu0 %1552
    %1554 = vrot.lane.b32.xlu0 %v1549, 32
    %v1555 = vpop.permute.xlu0 %1554
    %1558 = vst.msk [vmem:[#allocation2 + $0x8] sm:$0x4] %vm564, %v1553
    %1559 = vst.msk [vmem:[#allocation2 + $0x18] sm:$0x4] %vm564, %v1555
    %v1560 = vrot.slane %v1548, 2
    %v1561 = vrot.slane %v1549, 1
    %v1562 = vsel %vm320, %v1561, %v1560
    %1563 = vrot.lane.b32.xlu0 %v1562, 32
    %v1564 = vpop.permute.xlu0 %1563
    %v1565 = vsel %vm204, %v1564, 0
    %1567 = vmatpush.msra.mxu0 0.0
    %1568 = vmatpush.msra.mxu0 0.0
    %1569 = vmatpush.msra.mxu0 0.0
    %1570 = vmatpush.msra.mxu0 0.0
    %1571 = vmatpush.msra.mxu0 0.0
    %1572 = vmatpush.msra.mxu0 0.0
    %1573 = vmatpush.msra.mxu0 0.0
    %1574 = vmatpush.msra.mxu0 0.0
    %1575 = vmatpush.msra.mxu0 0.0
    %1576 = vmatpush.msra.mxu0 0.0
    %1577 = vmatpush.msra.mxu0 0.0
    %1578 = vmatpush.msra.mxu0 0.0
    %1579 = vmatpush.msra.mxu0 %v158
    %1580 = vmatpush.msra.mxu0 %v157
    %1581 = vmatpush.msra.mxu0 %v156
    %1582 = vmatpush.msra.mxu0 %v155
    %1583 = vmatmul.f32.gmra.mxu0 %v1565
    %v1584 = vpop.f32.mrf.mxu0
    %v1585 = vadd.f32 0.0, %v1584
    %1586 = vdwg.mxu0
    %v1588 = vrot.slane %v1585, 5
    %v1589 = vrot.slane %v1585, 6
    %v1592 = vadd.f32 %v196, %v1588
    %v1593 = vadd.f32 %v202, %v1589
    %v1594 = vxor.u32 %v1592, 2147483648
    %v1595 = vxor.u32 %v1593, 2147483648
    %v1596 = vmul.f32 %v1594, 1.442695
    %v1597 = vpow.pop %v1596
    %v1598 = vmul.f32 %v1595, 1.442695
    %v1599 = vpow.pop %v1598
    %v1600 = vadd.f32 %v1597, 1.0
    %v1601 = vadd.f32 %v1599, 1.0
    %v1602 = vrcp.pop %v1600
    %v1603 = vmul.f32 %v1600, %v1602
    %v1604 = vsub.f32 1.0, %v1603
    %v1605 = vmul.f32 %v1602, %v1604
    %v1606 = vadd.f32 %v1602, %v1605
    %vm1607 = vweird.f32 %v1600
    %vm1608 = vweird.f32 %v1602
    %vm1609 = vmor %vm1607, %vm1608
    %v1610 = vsel %vm1609, %v1602, %v1606
    %v1611 = vand.u32 2147483647, %v1600
    %vm1612 = vcmp.eq.f32.partialorder %v1611, 8.507059e+37
    %v1613 = vand.u32 %v1600, 2147483648
    %v1614 = vor.u32 1.1754944e-38, %v1613
    %v1615 = vsel %vm1612, %v1614, %v1610
    %v1616 = vmul.f32 1.0, %v1615
    %v1617 = vrcp.pop %v1601
    %v1618 = vmul.f32 %v1601, %v1617
    %v1619 = vsub.f32 1.0, %v1618
    %v1620 = vmul.f32 %v1617, %v1619
    %v1621 = vadd.f32 %v1617, %v1620
    %vm1622 = vweird.f32 %v1601
    %vm1623 = vweird.f32 %v1617
    %vm1624 = vmor %vm1622, %vm1623
    %v1625 = vsel %vm1624, %v1617, %v1621
    %v1626 = vand.u32 2147483647, %v1601
    %vm1627 = vcmp.eq.f32.partialorder %v1626, 8.507059e+37
    %v1628 = vand.u32 %v1601, 2147483648
    %v1629 = vor.u32 1.1754944e-38, %v1628
    %v1630 = vsel %vm1627, %v1629, %v1625
    %v1631 = vmul.f32 1.0, %v1630
    %v1632 = vtanh.pop %v1592
    %v1633 = vtanh.pop %v1593
    %v1636 = vrot.slane %v1536, 7
    %v1637 = vrot.slane %v1537, 7
    %v1640 = vmul.f32 %v1616, %v1636
    %v1641 = vmul.f32 %v1631, %v1637
    %1644 = vrot.lane.b32.xlu0 %v1632, 64
    %v1645 = vpop.permute.xlu0 %1644
    %1646 = vrot.lane.b32.xlu0 %v1633, 64
    %v1647 = vpop.permute.xlu0 %1646
    %v1650 = vmul.f32 %v1616, %v1645
    %v1651 = vmul.f32 %v1631, %v1647
    %1654 = vrot.lane.b32.xlu0 %v1650, 32
    %v1655 = vpop.permute.xlu0 %1654
    %1656 = vrot.lane.b32.xlu0 %v1651, 32
    %v1657 = vpop.permute.xlu0 %1656
    %v1660 = vadd.f32 %v1640, %v1655
    %v1661 = vadd.f32 %v1641, %v1657
    %v1662 = vtanh.pop %v1660
    %v1663 = vtanh.pop %v1661
    %1666 = vrot.lane.b32.xlu0 %v1662, 64
    %v1667 = vpop.permute.xlu0 %1666
    %1668 = vrot.lane.b32.xlu0 %v1663, 64
    %v1669 = vpop.permute.xlu0 %1668
    %v1672 = vmul.f32 %v1616, %v1667
    %v1673 = vmul.f32 %v1631, %v1669
    %1676 = vrot.lane.b32.xlu0 %v1672, 32
    %v1677 = vpop.permute.xlu0 %1676
    %1678 = vrot.lane.b32.xlu0 %v1673, 32
    %v1679 = vpop.permute.xlu0 %1678
    %1682 = vst.msk [vmem:[#allocation2 + $0x8] sm:$0x8] %vm689, %v1677
    %1683 = vst.msk [vmem:[#allocation2 + $0x18] sm:$0x8] %vm689, %v1679
    %v1684 = vrot.slane %v1672, 3
    %v1685 = vrot.slane %v1673, 2
    %v1686 = vsel %vm320, %v1685, %v1684
    %1687 = vrot.lane.b32.xlu0 %v1686, 32
    %v1688 = vpop.permute.xlu0 %1687
    %v1689 = vsel %vm204, %v1688, 0
    %1691 = vmatpush.msra.mxu0 0.0
    %1692 = vmatpush.msra.mxu0 0.0
    %1693 = vmatpush.msra.mxu0 0.0
    %1694 = vmatpush.msra.mxu0 0.0
    %1695 = vmatpush.msra.mxu0 0.0
    %1696 = vmatpush.msra.mxu0 0.0
    %1697 = vmatpush.msra.mxu0 0.0
    %1698 = vmatpush.msra.mxu0 0.0
    %1699 = vmatpush.msra.mxu0 0.0
    %1700 = vmatpush.msra.mxu0 0.0
    %1701 = vmatpush.msra.mxu0 0.0
    %1702 = vmatpush.msra.mxu0 0.0
    %1703 = vmatpush.msra.mxu0 %v158
    %1704 = vmatpush.msra.mxu0 %v157
    %1705 = vmatpush.msra.mxu0 %v156
    %1706 = vmatpush.msra.mxu0 %v155
    %1707 = vmatmul.f32.gmra.mxu0 %v1689
    %v1708 = vpop.f32.mrf.mxu0
    %v1709 = vadd.f32 0.0, %v1708
    %1710 = vdwg.mxu0
    %v1712 = vrot.slane %v1709, 4
    %v1713 = vrot.slane %v1709, 5
    %v1716 = vadd.f32 %v196, %v1712
    %v1717 = vadd.f32 %v202, %v1713
    %v1718 = vxor.u32 %v1716, 2147483648
    %v1719 = vxor.u32 %v1717, 2147483648
    %v1720 = vmul.f32 %v1718, 1.442695
    %v1721 = vpow.pop %v1720
    %v1722 = vmul.f32 %v1719, 1.442695
    %v1723 = vpow.pop %v1722
    %v1724 = vadd.f32 %v1721, 1.0
    %v1725 = vadd.f32 %v1723, 1.0
    %v1726 = vrcp.pop %v1724
    %v1727 = vmul.f32 %v1724, %v1726
    %v1728 = vsub.f32 1.0, %v1727
    %v1729 = vmul.f32 %v1726, %v1728
    %v1730 = vadd.f32 %v1726, %v1729
    %vm1731 = vweird.f32 %v1724
    %vm1732 = vweird.f32 %v1726
    %vm1733 = vmor %vm1731, %vm1732
    %v1734 = vsel %vm1733, %v1726, %v1730
    %v1735 = vand.u32 2147483647, %v1724
    %vm1736 = vcmp.eq.f32.partialorder %v1735, 8.507059e+37
    %v1737 = vand.u32 %v1724, 2147483648
    %v1738 = vor.u32 1.1754944e-38, %v1737
    %v1739 = vsel %vm1736, %v1738, %v1734
    %v1740 = vmul.f32 1.0, %v1739
    %v1741 = vrcp.pop %v1725
    %v1742 = vmul.f32 %v1725, %v1741
    %v1743 = vsub.f32 1.0, %v1742
    %v1744 = vmul.f32 %v1741, %v1743
    %v1745 = vadd.f32 %v1741, %v1744
    %vm1746 = vweird.f32 %v1725
    %vm1747 = vweird.f32 %v1741
    %vm1748 = vmor %vm1746, %vm1747
    %v1749 = vsel %vm1748, %v1741, %v1745
    %v1750 = vand.u32 2147483647, %v1725
    %vm1751 = vcmp.eq.f32.partialorder %v1750, 8.507059e+37
    %v1752 = vand.u32 %v1725, 2147483648
    %v1753 = vor.u32 1.1754944e-38, %v1752
    %v1754 = vsel %vm1751, %v1753, %v1749
    %v1755 = vmul.f32 1.0, %v1754
    %v1756 = vtanh.pop %v1716
    %v1757 = vtanh.pop %v1717
    %v1760 = vrot.slane %v1660, 7
    %v1761 = vrot.slane %v1661, 7
    %v1764 = vmul.f32 %v1740, %v1760
    %v1765 = vmul.f32 %v1755, %v1761
    %1768 = vrot.lane.b32.xlu0 %v1756, 64
    %v1769 = vpop.permute.xlu0 %1768
    %1770 = vrot.lane.b32.xlu0 %v1757, 64
    %v1771 = vpop.permute.xlu0 %1770
    %v1774 = vmul.f32 %v1740, %v1769
    %v1775 = vmul.f32 %v1755, %v1771
    %1778 = vrot.lane.b32.xlu0 %v1774, 32
    %v1779 = vpop.permute.xlu0 %1778
    %1780 = vrot.lane.b32.xlu0 %v1775, 32
    %v1781 = vpop.permute.xlu0 %1780
    %v1784 = vadd.f32 %v1764, %v1779
    %v1785 = vadd.f32 %v1765, %v1781
    %v1786 = vtanh.pop %v1784
    %v1787 = vtanh.pop %v1785
    %1790 = vrot.lane.b32.xlu0 %v1786, 64
    %v1791 = vpop.permute.xlu0 %1790
    %1792 = vrot.lane.b32.xlu0 %v1787, 64
    %v1793 = vpop.permute.xlu0 %1792
    %v1796 = vmul.f32 %v1740, %v1791
    %v1797 = vmul.f32 %v1755, %v1793
    %1800 = vrot.lane.b32.xlu0 %v1796, 32
    %v1801 = vpop.permute.xlu0 %1800
    %1802 = vrot.lane.b32.xlu0 %v1797, 32
    %v1803 = vpop.permute.xlu0 %1802
    %1806 = vst.msk [vmem:[#allocation2 + $0x8] sm:$0x10] %vm814, %v1801
    %1807 = vst.msk [vmem:[#allocation2 + $0x18] sm:$0x10] %vm814, %v1803
    %v1808 = vrot.slane %v1796, 4
    %v1809 = vrot.slane %v1797, 3
    %v1810 = vsel %vm320, %v1809, %v1808
    %1811 = vrot.lane.b32.xlu0 %v1810, 32
    %v1812 = vpop.permute.xlu0 %1811
    %v1813 = vsel %vm204, %v1812, 0
    %1815 = vmatpush.msra.mxu0 0.0
    %1816 = vmatpush.msra.mxu0 0.0
    %1817 = vmatpush.msra.mxu0 0.0
    %1818 = vmatpush.msra.mxu0 0.0
    %1819 = vmatpush.msra.mxu0 0.0
    %1820 = vmatpush.msra.mxu0 0.0
    %1821 = vmatpush.msra.mxu0 0.0
    %1822 = vmatpush.msra.mxu0 0.0
    %1823 = vmatpush.msra.mxu0 0.0
    %1824 = vmatpush.msra.mxu0 0.0
    %1825 = vmatpush.msra.mxu0 0.0
    %1826 = vmatpush.msra.mxu0 0.0
    %1827 = vmatpush.msra.mxu0 %v158
    %1828 = vmatpush.msra.mxu0 %v157
    %1829 = vmatpush.msra.mxu0 %v156
    %1830 = vmatpush.msra.mxu0 %v155
    %1831 = vmatmul.f32.gmra.mxu0 %v1813
    %v1832 = vpop.f32.mrf.mxu0
    %v1833 = vadd.f32 0.0, %v1832
    %1834 = vdwg.mxu0
    %v1836 = vrot.slane %v1833, 3
    %v1837 = vrot.slane %v1833, 4
    %v1840 = vadd.f32 %v196, %v1836
    %v1841 = vadd.f32 %v202, %v1837
    %v1842 = vxor.u32 %v1840, 2147483648
    %v1843 = vxor.u32 %v1841, 2147483648
    %v1844 = vmul.f32 %v1842, 1.442695
    %v1845 = vpow.pop %v1844
    %v1846 = vmul.f32 %v1843, 1.442695
    %v1847 = vpow.pop %v1846
    %v1848 = vadd.f32 %v1845, 1.0
    %v1849 = vadd.f32 %v1847, 1.0
    %v1850 = vrcp.pop %v1848
    %v1851 = vmul.f32 %v1848, %v1850
    %v1852 = vsub.f32 1.0, %v1851
    %v1853 = vmul.f32 %v1850, %v1852
    %v1854 = vadd.f32 %v1850, %v1853
    %vm1855 = vweird.f32 %v1848
    %vm1856 = vweird.f32 %v1850
    %vm1857 = vmor %vm1855, %vm1856
    %v1858 = vsel %vm1857, %v1850, %v1854
    %v1859 = vand.u32 2147483647, %v1848
    %vm1860 = vcmp.eq.f32.partialorder %v1859, 8.507059e+37
    %v1861 = vand.u32 %v1848, 2147483648
    %v1862 = vor.u32 1.1754944e-38, %v1861
    %v1863 = vsel %vm1860, %v1862, %v1858
    %v1864 = vmul.f32 1.0, %v1863
    %v1865 = vrcp.pop %v1849
    %v1866 = vmul.f32 %v1849, %v1865
    %v1867 = vsub.f32 1.0, %v1866
    %v1868 = vmul.f32 %v1865, %v1867
    %v1869 = vadd.f32 %v1865, %v1868
    %vm1870 = vweird.f32 %v1849
    %vm1871 = vweird.f32 %v1865
    %vm1872 = vmor %vm1870, %vm1871
    %v1873 = vsel %vm1872, %v1865, %v1869
    %v1874 = vand.u32 2147483647, %v1849
    %vm1875 = vcmp.eq.f32.partialorder %v1874, 8.507059e+37
    %v1876 = vand.u32 %v1849, 2147483648
    %v1877 = vor.u32 1.1754944e-38, %v1876
    %v1878 = vsel %vm1875, %v1877, %v1873
    %v1879 = vmul.f32 1.0, %v1878
    %v1880 = vtanh.pop %v1840
    %v1881 = vtanh.pop %v1841
    %v1884 = vrot.slane %v1784, 7
    %v1885 = vrot.slane %v1785, 7
    %v1888 = vmul.f32 %v1864, %v1884
    %v1889 = vmul.f32 %v1879, %v1885
    %1892 = vrot.lane.b32.xlu0 %v1880, 64
    %v1893 = vpop.permute.xlu0 %1892
    %1894 = vrot.lane.b32.xlu0 %v1881, 64
    %v1895 = vpop.permute.xlu0 %1894
    %v1898 = vmul.f32 %v1864, %v1893
    %v1899 = vmul.f32 %v1879, %v1895
    %1902 = vrot.lane.b32.xlu0 %v1898, 32
    %v1903 = vpop.permute.xlu0 %1902
    %1904 = vrot.lane.b32.xlu0 %v1899, 32
    %v1905 = vpop.permute.xlu0 %1904
    %v1908 = vadd.f32 %v1888, %v1903
    %v1909 = vadd.f32 %v1889, %v1905
    %v1910 = vtanh.pop %v1908
    %v1911 = vtanh.pop %v1909
    %1914 = vrot.lane.b32.xlu0 %v1910, 64
    %v1915 = vpop.permute.xlu0 %1914
    %1916 = vrot.lane.b32.xlu0 %v1911, 64
    %v1917 = vpop.permute.xlu0 %1916
    %v1920 = vmul.f32 %v1864, %v1915
    %v1921 = vmul.f32 %v1879, %v1917
    %1924 = vrot.lane.b32.xlu0 %v1920, 32
    %v1925 = vpop.permute.xlu0 %1924
    %1926 = vrot.lane.b32.xlu0 %v1921, 32
    %v1927 = vpop.permute.xlu0 %1926
    %1930 = vst.msk [vmem:[#allocation2 + $0x8] sm:$0x20] %vm939, %v1925
    %1931 = vst.msk [vmem:[#allocation2 + $0x18] sm:$0x20] %vm939, %v1927
    %v1932 = vrot.slane %v1920, 5
    %v1933 = vrot.slane %v1921, 4
    %v1934 = vsel %vm320, %v1933, %v1932
    %1935 = vrot.lane.b32.xlu0 %v1934, 32
    %v1936 = vpop.permute.xlu0 %1935
    %v1937 = vsel %vm204, %v1936, 0
    %1939 = vmatpush.msra.mxu0 0.0
    %1940 = vmatpush.msra.mxu0 0.0
    %1941 = vmatpush.msra.mxu0 0.0
    %1942 = vmatpush.msra.mxu0 0.0
    %1943 = vmatpush.msra.mxu0 0.0
    %1944 = vmatpush.msra.mxu0 0.0
    %1945 = vmatpush.msra.mxu0 0.0
    %1946 = vmatpush.msra.mxu0 0.0
    %1947 = vmatpush.msra.mxu0 0.0
    %1948 = vmatpush.msra.mxu0 0.0
    %1949 = vmatpush.msra.mxu0 0.0
    %1950 = vmatpush.msra.mxu0 0.0
    %1951 = vmatpush.msra.mxu0 %v158
    %1952 = vmatpush.msra.mxu0 %v157
    %1953 = vmatpush.msra.mxu0 %v156
    %1954 = vmatpush.msra.mxu0 %v155
    %1955 = vmatmul.f32.gmra.mxu0 %v1937
    %v1956 = vpop.f32.mrf.mxu0
    %v1957 = vadd.f32 0.0, %v1956
    %1958 = vdwg.mxu0
    %v1960 = vrot.slane %v1957, 2
    %v1961 = vrot.slane %v1957, 3
    %v1964 = vadd.f32 %v196, %v1960
    %v1965 = vadd.f32 %v202, %v1961
    %v1966 = vxor.u32 %v1964, 2147483648
    %v1967 = vxor.u32 %v1965, 2147483648
    %v1968 = vmul.f32 %v1966, 1.442695
    %v1969 = vpow.pop %v1968
    %v1970 = vmul.f32 %v1967, 1.442695
    %v1971 = vpow.pop %v1970
    %v1972 = vadd.f32 %v1969, 1.0
    %v1973 = vadd.f32 %v1971, 1.0
    %v1974 = vrcp.pop %v1972
    %v1975 = vmul.f32 %v1972, %v1974
    %v1976 = vsub.f32 1.0, %v1975
    %v1977 = vmul.f32 %v1974, %v1976
    %v1978 = vadd.f32 %v1974, %v1977
    %vm1979 = vweird.f32 %v1972
    %vm1980 = vweird.f32 %v1974
    %vm1981 = vmor %vm1979, %vm1980
    %v1982 = vsel %vm1981, %v1974, %v1978
    %v1983 = vand.u32 2147483647, %v1972
    %vm1984 = vcmp.eq.f32.partialorder %v1983, 8.507059e+37
    %v1985 = vand.u32 %v1972, 2147483648
    %v1986 = vor.u32 1.1754944e-38, %v1985
    %v1987 = vsel %vm1984, %v1986, %v1982
    %v1988 = vmul.f32 1.0, %v1987
    %v1989 = vrcp.pop %v1973
    %v1990 = vmul.f32 %v1973, %v1989
    %v1991 = vsub.f32 1.0, %v1990
    %v1992 = vmul.f32 %v1989, %v1991
    %v1993 = vadd.f32 %v1989, %v1992
    %vm1994 = vweird.f32 %v1973
    %vm1995 = vweird.f32 %v1989
    %vm1996 = vmor %vm1994, %vm1995
    %v1997 = vsel %vm1996, %v1989, %v1993
    %v1998 = vand.u32 2147483647, %v1973
    %vm1999 = vcmp.eq.f32.partialorder %v1998, 8.507059e+37
    %v2000 = vand.u32 %v1973, 2147483648
    %v2001 = vor.u32 1.1754944e-38, %v2000
    %v2002 = vsel %vm1999, %v2001, %v1997
    %v2003 = vmul.f32 1.0, %v2002
    %v2004 = vtanh.pop %v1964
    %v2005 = vtanh.pop %v1965
    %v2008 = vrot.slane %v1908, 7
    %v2009 = vrot.slane %v1909, 7
    %v2012 = vmul.f32 %v1988, %v2008
    %v2013 = vmul.f32 %v2003, %v2009
    %2016 = vrot.lane.b32.xlu0 %v2004, 64
    %v2017 = vpop.permute.xlu0 %2016
    %2018 = vrot.lane.b32.xlu0 %v2005, 64
    %v2019 = vpop.permute.xlu0 %2018
    %v2022 = vmul.f32 %v1988, %v2017
    %v2023 = vmul.f32 %v2003, %v2019
    %2026 = vrot.lane.b32.xlu0 %v2022, 32
    %v2027 = vpop.permute.xlu0 %2026
    %2028 = vrot.lane.b32.xlu0 %v2023, 32
    %v2029 = vpop.permute.xlu0 %2028
    %v2032 = vadd.f32 %v2012, %v2027
    %v2033 = vadd.f32 %v2013, %v2029
    %v2034 = vtanh.pop %v2032
    %v2035 = vtanh.pop %v2033
    %2038 = vrot.lane.b32.xlu0 %v2034, 64
    %v2039 = vpop.permute.xlu0 %2038
    %2040 = vrot.lane.b32.xlu0 %v2035, 64
    %v2041 = vpop.permute.xlu0 %2040
    %v2044 = vmul.f32 %v1988, %v2039
    %v2045 = vmul.f32 %v2003, %v2041
    %2048 = vrot.lane.b32.xlu0 %v2044, 32
    %v2049 = vpop.permute.xlu0 %2048
    %2050 = vrot.lane.b32.xlu0 %v2045, 32
    %v2051 = vpop.permute.xlu0 %2050
    %2054 = vst.msk [vmem:[#allocation2 + $0x8] sm:$0x40] %vm1064, %v2049
    %2055 = vst.msk [vmem:[#allocation2 + $0x18] sm:$0x40] %vm1064, %v2051
    %v2056 = vrot.slane %v2044, 6
    %v2057 = vrot.slane %v2045, 5
    %v2058 = vsel %vm320, %v2057, %v2056
    %2059 = vrot.lane.b32.xlu0 %v2058, 32
    %v2060 = vpop.permute.xlu0 %2059
    %v2061 = vsel %vm204, %v2060, 0
    %2063 = vmatpush.msra.mxu0 0.0
    %2064 = vmatpush.msra.mxu0 0.0
    %2065 = vmatpush.msra.mxu0 0.0
    %2066 = vmatpush.msra.mxu0 0.0
    %2067 = vmatpush.msra.mxu0 0.0
    %2068 = vmatpush.msra.mxu0 0.0
    %2069 = vmatpush.msra.mxu0 0.0
    %2070 = vmatpush.msra.mxu0 0.0
    %2071 = vmatpush.msra.mxu0 0.0
    %2072 = vmatpush.msra.mxu0 0.0
    %2073 = vmatpush.msra.mxu0 0.0
    %2074 = vmatpush.msra.mxu0 0.0
    %2075 = vmatpush.msra.mxu0 %v158
    %2076 = vmatpush.msra.mxu0 %v157
    %2077 = vmatpush.msra.mxu0 %v156
    %2078 = vmatpush.msra.mxu0 %v155
    %2079 = vmatmul.f32.gmra.mxu0 %v2061
    %v2080 = vpop.f32.mrf.mxu0
    %v2081 = vadd.f32 0.0, %v2080
    %2082 = vdwg.mxu0
    %v2084 = vrot.slane %v2081, 1
    %v2085 = vrot.slane %v2081, 2
    %v2088 = vadd.f32 %v196, %v2084
    %v2089 = vadd.f32 %v202, %v2085
    %v2090 = vxor.u32 %v2088, 2147483648
    %v2091 = vxor.u32 %v2089, 2147483648
    %v2092 = vmul.f32 %v2090, 1.442695
    %v2093 = vpow.pop %v2092
    %v2094 = vmul.f32 %v2091, 1.442695
    %v2095 = vpow.pop %v2094
    %v2096 = vadd.f32 %v2093, 1.0
    %v2097 = vadd.f32 %v2095, 1.0
    %v2098 = vrcp.pop %v2096
    %v2099 = vmul.f32 %v2096, %v2098
    %v2100 = vsub.f32 1.0, %v2099
    %v2101 = vmul.f32 %v2098, %v2100
    %v2102 = vadd.f32 %v2098, %v2101
    %vm2103 = vweird.f32 %v2096
    %vm2104 = vweird.f32 %v2098
    %vm2105 = vmor %vm2103, %vm2104
    %v2106 = vsel %vm2105, %v2098, %v2102
    %v2107 = vand.u32 2147483647, %v2096
    %vm2108 = vcmp.eq.f32.partialorder %v2107, 8.507059e+37
    %v2109 = vand.u32 %v2096, 2147483648
    %v2110 = vor.u32 1.1754944e-38, %v2109
    %v2111 = vsel %vm2108, %v2110, %v2106
    %v2112 = vmul.f32 1.0, %v2111
    %v2113 = vrcp.pop %v2097
    %v2114 = vmul.f32 %v2097, %v2113
    %v2115 = vsub.f32 1.0, %v2114
    %v2116 = vmul.f32 %v2113, %v2115
    %v2117 = vadd.f32 %v2113, %v2116
    %vm2118 = vweird.f32 %v2097
    %vm2119 = vweird.f32 %v2113
    %vm2120 = vmor %vm2118, %vm2119
    %v2121 = vsel %vm2120, %v2113, %v2117
    %v2122 = vand.u32 2147483647, %v2097
    %vm2123 = vcmp.eq.f32.partialorder %v2122, 8.507059e+37
    %v2124 = vand.u32 %v2097, 2147483648
    %v2125 = vor.u32 1.1754944e-38, %v2124
    %v2126 = vsel %vm2123, %v2125, %v2121
    %v2127 = vmul.f32 1.0, %v2126
    %v2128 = vtanh.pop %v2088
    %v2129 = vtanh.pop %v2089
    %v2132 = vrot.slane %v2032, 7
    %v2133 = vrot.slane %v2033, 7
    %v2136 = vmul.f32 %v2112, %v2132
    %v2137 = vmul.f32 %v2127, %v2133
    %2140 = vrot.lane.b32.xlu0 %v2128, 64
    %v2141 = vpop.permute.xlu0 %2140
    %2142 = vrot.lane.b32.xlu0 %v2129, 64
    %v2143 = vpop.permute.xlu0 %2142
    %v2146 = vmul.f32 %v2112, %v2141
    %v2147 = vmul.f32 %v2127, %v2143
    %2150 = vrot.lane.b32.xlu0 %v2146, 32
    %v2151 = vpop.permute.xlu0 %2150
    %2152 = vrot.lane.b32.xlu0 %v2147, 32
    %v2153 = vpop.permute.xlu0 %2152
    %v2156 = vadd.f32 %v2136, %v2151
    %v2157 = vadd.f32 %v2137, %v2153
    %v2158 = vtanh.pop %v2156
    %v2159 = vtanh.pop %v2157
    %2162 = vrot.lane.b32.xlu0 %v2158, 64
    %v2163 = vpop.permute.xlu0 %2162
    %2164 = vrot.lane.b32.xlu0 %v2159, 64
    %v2165 = vpop.permute.xlu0 %2164
    %v2168 = vmul.f32 %v2112, %v2163
    %v2169 = vmul.f32 %v2127, %v2165
    %2172 = vrot.lane.b32.xlu0 %v2168, 32
    %v2173 = vpop.permute.xlu0 %2172
    %2174 = vrot.lane.b32.xlu0 %v2169, 32
    %v2175 = vpop.permute.xlu0 %2174
    %2178 = vst.msk [vmem:[#allocation2 + $0x8] sm:$0x80] %vm1189, %v2173
    %2179 = vst.msk [vmem:[#allocation2 + $0x18] sm:$0x80] %vm1189, %v2175
    %v2180 = vld [vmem:[#allocation2] sm:$0xff]
    %v2181 = vld [vmem:[#allocation2 + $0x8] sm:$0xff]
    %v2182 = vld [vmem:[#allocation2 + $0x10] sm:$0xff]
    %v2183 = vld [vmem:[#allocation2 + $0x18] sm:$0xff]
    %v2184 = vld [vmem:[%s6] sm:$0xff]
    %v2185 = vld [vmem:[%s6 + $0x8] sm:$0xff]
    %v2186 = vld [vmem:[%s6 + $0x10] sm:$0xff]
    %v2187 = vld [vmem:[%s6 + $0x18] sm:$0xff]
    %v2188 = vld [vmem:[%s7] sm:$0x1]
    %v2190 = vperm.slane %v2188, 0
    %v2193 = vsel %vm204, %v2180, 0
    %v2196 = vsel %vm204, %v2181, 0
    %v2199 = vsel %vm204, %v2182, 0
    %v2202 = vsel %vm204, %v2183, 0
    %2204 = vmatpush.msra.mxu0 0.0
    %2205 = vmatpush.msra.mxu0 0.0
    %2206 = vmatpush.msra.mxu0 0.0
    %2207 = vmatpush.msra.mxu0 0.0
    %2208 = vmatpush.msra.mxu0 0.0
    %2209 = vmatpush.msra.mxu0 0.0
    %2210 = vmatpush.msra.mxu0 0.0
    %2211 = vmatpush.msra.mxu0 0.0
    %2212 = vmatpush.msra.mxu0 0.0
    %2213 = vmatpush.msra.mxu0 0.0
    %2214 = vmatpush.msra.mxu0 0.0
    %2215 = vmatpush.msra.mxu0 0.0
    %2216 = vmatpush.msra.mxu0 %v2187
    %2217 = vmatpush.msra.mxu0 %v2186
    %2218 = vmatpush.msra.mxu0 %v2185
    %2219 = vmatpush.msra.mxu0 %v2184
    %2220 = vmatmul.f32.gmra.mxu0 %v2193
    %v2221 = vpop.f32.mrf.mxu0
    %v2222 = vadd.f32 %v2190, %v2221
    %2223 = vmatmul.f32.gmra.mxu0 %v2196
    %v2224 = vpop.f32.mrf.mxu0
    %v2225 = vadd.f32 %v2190, %v2224
    %2226 = vmatmul.f32.gmra.mxu0 %v2199
    %v2227 = vpop.f32.mrf.mxu0
    %v2228 = vadd.f32 %v2190, %v2227
    %2229 = vmatmul.f32.gmra.mxu0 %v2202
    %v2230 = vpop.f32.mrf.mxu0
    %v2231 = vadd.f32 %v2190, %v2230
    %2232 = vdwg.mxu0
    %v2233 = vmax.f32 %v2222, 0.0
    %v2234 = vmax.f32 %v2225, 0.0
    %v2235 = vmax.f32 %v2228, 0.0
    %v2236 = vmax.f32 %v2231, 0.0
    %vm2237 = vcmask 130048
    %2238 = vst.msk [vmem:[#allocation3] sm:$0xff] %vm2237, %v2233
    %2239 = vst.msk [vmem:[#allocation3 + $0x8] sm:$0xff] %vm2237, %v2234
    %2240 = vst.msk [vmem:[#allocation3 + $0x10] sm:$0xff] %vm2237, %v2235
    %2241 = vst.msk [vmem:[#allocation3 + $0x18] sm:$0xff] %vm2237, %v2236
    // Predicated region
    $region34: #{_lambda_.1} parent=1 // pred_check
      _
    $region35: #{_lambda_.1} parent=1 // pred_check_branch
      %2243 = sbr.rel (0) target = $region37
    $region36: #{_lambda_.1} parent=1 // pred_region
      %2245 = vsyncadd [#allocation4], 0
      %s2246 = sshll.u32 [#allocation3], 4
      %s2247 = int_to_ptr.vmem [resolvable:$true] %s2246
      %s2248 = sshll.u32 %s8, 4
      %s2249 = int_to_ptr.hbm [resolvable:$true] %s2248
      %2254 = dma.vmem_to_hbm [thread:$0]  %s2247, 512, %s2249, [#allocation4], 128, 128, 8
    $region37: #{_lambda_.1} parent=1 // pred_fallthru
      _
    // Predicated region
    $region38: #{_lambda_.1} parent=1 // pred_check
      _
    $region39: #{_lambda_.1} parent=1 // pred_check_branch
      %2256 = sbr.rel (0) target = $region41
    $region40: #{_lambda_.1} parent=1 // pred_region
      %2258 = dma.done [#allocation4], 512
    $region41: #{_lambda_.1} parent=1 // pred_fallthru
      _
    %2259 = vsyncpa [#allocation4], 1

</llo_original>
